<compile_context>
chip_gen: v5e
topology: v5e:2x2
jax: 0.10.0
libtpu: 0.0.40
codegen_flags: <defaults>
</compile_context>

<pallas_src>
import jax
import jax.numpy as jnp
from jax.experimental import pallas as pl
from jax.experimental.pallas import tpu as pltpu

LEAK = 0.2
BN_EPS = 1e-5


def _round_up(x, m):
    return ((x + m - 1) // m) * m


# ----------------------------------------------------------------------------
# Pallas kernel: tiled (im2col-matmul + folded BN bias + LeakyReLU)
# ----------------------------------------------------------------------------
def _conv_mm_kernel(p_ref, w_ref, b_ref, o_ref, acc_ref):
    # p_ref: (TM, TK) bf16 im2col patch tile
    # w_ref: (TK, TN) bf16 weight tile (BN scale already folded in)
    # b_ref: (1, TN)  f32 folded BN bias
    # acc_ref: (TM, TN) f32 accumulator, resident across the K grid axis
    @pl.when(pl.program_id(2) == 0)
    def _():
        acc_ref[...] = jnp.zeros_like(acc_ref)

    acc_ref[...] += jnp.dot(p_ref[...], w_ref[...],
                            preferred_element_type=jnp.float32)

    @pl.when(pl.program_id(2) == pl.num_programs(2) - 1)
    def _():
        y = acc_ref[...] + b_ref[...]
        o_ref[...] = jnp.where(y >= 0, y, LEAK * y).astype(o_ref.dtype)


def fused_conv_bn_lrelu(x_nhwc, w_oihw, scale, bias, stride, pad):
    """One Conv2d(bias=False) + (folded, eval-mode) BatchNorm + LeakyReLU(0.2)."""
    N, H, W, Cin = x_nhwc.shape
    Cout, Cin_w, K, _ = w_oihw.shape
    assert Cin == Cin_w

    # --- pad input channels so Kdim = K*K*Cin is MXU/lane friendly (layer 1: 3->8)
    if K == 4 and Cin % 8 != 0:
        cpad = _round_up(Cin, 8) - Cin
        x_nhwc = jnp.pad(x_nhwc, ((0, 0), (0, 0), (0, 0), (0, cpad)))
        w_oihw = jnp.pad(w_oihw, ((0, 0), (0, cpad), (0, 0), (0, 0)))
        Cin += cpad

    # --- fold BN scale into the weight; bf16 MXU operands, f32 epilogue ------
    # PyTorch weight (Cout, Cin, K, K) -> (K, K, Cin, Cout) -> (Kdim, Cout),
    # matching the (kh, kw, cin) ordering of the patches below.
    Kdim = K * K * Cin
    w_mat = jnp.transpose(w_oihw, (2, 3, 1, 0)).reshape(Kdim, Cout)
    w_mat = (w_mat * scale[None, :]).astype(jnp.bfloat16)

    # --- glue: pad + im2col in bf16 (pure data movement / reshapes) ----------
    xp = jnp.pad(x_nhwc.astype(jnp.bfloat16),
                 ((0, 0), (pad, pad), (pad, pad), (0, 0)))
    OH = (H + 2 * pad - K) // stride + 1
    OW = (W + 2 * pad - K) // stride + 1
    cols = []
    for kh in range(K):
        for kw in range(K):
            cols.append(xp[:, kh:kh + stride * OH:stride,
                           kw:kw + stride * OW:stride, :])
    patches = jnp.stack(cols, axis=3).reshape(N * OH * OW, Kdim)
    M = N * OH * OW

    # --- tile sizes (fit comfortably in VMEM on v5e/v6e/v7x) -----------------
    TK = min(512, _round_up(Kdim, 128))
    Kp = _round_up(Kdim, TK)
    TN = 256 if (_round_up(Cout, 128) % 256 == 0) else 128
    Np = _round_up(Cout, TN)
    TM = 512 if M >= 512 else _round_up(M, 8)
    Mp = _round_up(M, TM)

    if Mp != M or Kp != Kdim:
        patches = jnp.pad(patches, ((0, Mp - M), (0, Kp - Kdim)))
    if Kp != Kdim or Np != Cout:
        w_mat = jnp.pad(w_mat, ((0, Kp - Kdim), (0, Np - Cout)))
    bias_p = jnp.pad(bias.astype(jnp.float32), (0, Np - Cout)).reshape(1, Np)

    out = pl.pallas_call(
        _conv_mm_kernel,
        out_shape=jax.ShapeDtypeStruct((Mp, Np), jnp.float32),
        grid_spec=pltpu.PrefetchScalarGridSpec(
            num_scalar_prefetch=0,
            grid=(Mp // TM, Np // TN, Kp // TK),   # K last
            in_specs=[
                pl.BlockSpec((TM, TK), lambda i, j, k: (i, k)),
                pl.BlockSpec((TK, TN), lambda i, j, k: (k, j)),
                pl.BlockSpec((1, TN), lambda i, j, k: (0, j)),
            ],
            out_specs=pl.BlockSpec((TM, TN), lambda i, j, k: (i, j)),
            scratch_shapes=[pltpu.VMEM((TM, TN), jnp.float32)],
        ),
        compiler_params=pltpu.CompilerParams(
            dimension_semantics=("parallel", "parallel", "arbitrary")),
    )(patches, w_mat, bias_p)

    return out[:M, :Cout].reshape(N, OH, OW, Cout)


# ----------------------------------------------------------------------------
# Deterministic parameter construction (mirrors D_NET256.__init__ conv trunk)
# ----------------------------------------------------------------------------
def init_params(key, ndf):
    # (cin, cout, kernel, stride, pad, has_batchnorm)
    cfg = [
        (3,        ndf,      4, 2, 1, False),  # encode_image_by_16times conv1
        (ndf,      ndf * 2,  4, 2, 1, True),   #   conv2 + BN
        (ndf * 2,  ndf * 4,  4, 2, 1, True),   #   conv3 + BN
        (ndf * 4,  ndf * 8,  4, 2, 1, True),   #   conv4 + BN
        (ndf * 8,  ndf * 16, 4, 2, 1, True),   # img_code_s32 (downBlock)
        (ndf * 16, ndf * 32, 4, 2, 1, True),   # img_code_s64 (downBlock)
        (ndf * 32, ndf * 16, 3, 1, 1, True),   # img_code_s64_1 (Block3x3_leakRelu)
        (ndf * 16, ndf * 8,  3, 1, 1, True),   # img_code_s64_2 (Block3x3_leakRelu)
    ]
    params = []
    for (cin, cout, k, s, p, has_bn) in cfg:
        key, k1, k2, k3, k4, k5 = jax.random.split(key, 6)
        w = 0.05 * jax.random.normal(k1, (cout, cin, k, k), jnp.float32)
        if has_bn:  # eval-mode BatchNorm folded into per-channel scale/bias
            gamma = 1.0 + 0.1 * jax.random.normal(k2, (cout,), jnp.float32)
            beta = 0.1 * jax.random.normal(k3, (cout,), jnp.float32)
            rmean = 0.1 * jax.random.normal(k4, (cout,), jnp.float32)
            rvar = jax.random.uniform(k5, (cout,), jnp.float32, 0.5, 1.5)
            scale = gamma / jnp.sqrt(rvar + BN_EPS)
            bias = beta - rmean * scale
        else:
            scale = jnp.ones((cout,), jnp.float32)
            bias = jnp.zeros((cout,), jnp.float32)
        params.append(dict(w=w, scale=scale, bias=bias, stride=s, pad=p))
    return params


# ----------------------------------------------------------------------------
# D_NET256.forward
# ----------------------------------------------------------------------------
def d_net256_forward(x_nchw, params):
    x = jnp.transpose(x_nchw, (0, 2, 3, 1))  # NCHW -> NHWC
    for p in params:
        x = fused_conv_bn_lrelu(x, p["w"], p["scale"], p["bias"],
                                p["stride"], p["pad"])
    return jnp.transpose(x, (0, 3, 1, 2))    # NHWC -> NCHW
    # TODO(synk): fuse the three 4x4-spatial tail layers into a single pallas_call
    # that keeps the activation in VMEM scratch (latency win at real batch sizes).


# Pure-JAX reference (lax.conv with the same bf16 operand quantization)
def ref_forward(x_nchw, params):
    x = x_nchw
    for p in params:
        w = p["w"] * p["scale"][:, None, None, None]
        y = jax.lax.conv_general_dilated(
            x.astype(jnp.bfloat16), w.astype(jnp.bfloat16),
            (p["stride"], p["stride"]),
            [(p["pad"], p["pad"]), (p["pad"], p["pad"])],
            dimension_numbers=("NCHW", "OIHW", "NCHW"),
            preferred_element_type=jnp.float32)
        y = y + p["bias"][None, :, None, None]
        x = jnp.where(y >= 0, y, LEAK * y)
    return x


if __name__ == "__main__":
    key = jax.random.PRNGKey(0)
    kx, kp = jax.random.split(key)

    ndf = 4                    # DF_DIM (small, synthetic)
    # EMBEDDING_DIM / D_GET_LOGITS heads are unused by D_NET256.forward.
    x = jax.random.normal(kx, (2, 3, 64, 64), jnp.float32)  # 6 stride-2 convs -> 1x1
    params = init_params(kp, ndf)

    out = d_net256_forward(x, params)
    out = jax.block_until_ready(out)
    assert out.shape == (2, ndf * 8, 1, 1), out.shape

    ref = ref_forward(x, params)
    assert jnp.allclose(out, ref, atol=1e-3, rtol=1e-3), \
        float(jnp.max(jnp.abs(out - ref)))

    print("KERNEL_OK")
</pallas_src>

<mosaic_0001>
module attributes {stable_mosaic.version = 11 : i64} {
  func.func @_conv_mm_kernel(%arg0: i32, %arg1: i32, %arg2: i32, %arg3: memref<512x128xbf16, #tpu.memory_space<vmem>>, %arg4: memref<128x128xbf16, #tpu.memory_space<vmem>>, %arg5: memref<1x128xf32, #tpu.memory_space<vmem>>, %arg6: memref<512x128xf32, #tpu.memory_space<vmem>>, %arg7: memref<512x128xf32, #tpu.memory_space<vmem>>) attributes {dimension_semantics = [#tpu.dimension_semantics<parallel>, #tpu.dimension_semantics<parallel>, #tpu.dimension_semantics<arbitrary>], iteration_bounds = array<i64: 4, 1, 1>, scalar_prefetch = 0 : i64, scratch_operands = 1 : i64, tpu.core_type = #tpu.core_type<tc>, window_params = [{transform_indices = @transform_0, window_bounds = array<i64: 512, 128>}, {transform_indices = @transform_1, window_bounds = array<i64: 128, 128>}, {transform_indices = @transform_2, window_bounds = array<i64: 1, 128>}, {transform_indices = @transform_3, window_bounds = array<i64: 512, 128>}]} {
    %c0_i32 = arith.constant 0 : i32
    %0 = arith.cmpi eq, %arg2, %c0_i32 : i32
    %1 = arith.extui %0 : i1 to i32
    %c0_i32_0 = arith.constant 0 : i32
    %2 = arith.cmpi ne, %1, %c0_i32_0 : i32
    scf.if %2 {
      %cst_10 = arith.constant 0.000000e+00 : f32
      %12 = vector.broadcast %cst_10 : f32 to vector<512x128xf32>
      %c0_11 = arith.constant 0 : index
      %c0_12 = arith.constant 0 : index
      %13 = vector.load %arg7[%c0_11, %c0_12] : memref<512x128xf32, #tpu.memory_space<vmem>>, vector<512x128xf32>
      tpu.vector_store %arg7[%c0_11, %c0_12], %12 {strides = array<i32>} : memref<512x128xf32, #tpu.memory_space<vmem>>, vector<512x128xf32>,
    } else {
    }
    %c0 = arith.constant 0 : index
    %c0_1 = arith.constant 0 : index
    %3 = vector.load %arg7[%c0, %c0_1] : memref<512x128xf32, #tpu.memory_space<vmem>>, vector<512x128xf32>
    %c0_2 = arith.constant 0 : index
    %c0_3 = arith.constant 0 : index
    %4 = vector.load %arg3[%c0_2, %c0_3] : memref<512x128xbf16, #tpu.memory_space<vmem>>, vector<512x128xbf16>
    %c0_4 = arith.constant 0 : index
    %c0_5 = arith.constant 0 : index
    %5 = vector.load %arg4[%c0_4, %c0_5] : memref<128x128xbf16, #tpu.memory_space<vmem>>, vector<128x128xbf16>
    %cst = arith.constant dense<0.000000e+00> : vector<512x128xf32>
    %6 = tpu.matmul %4, %5, %cst {dimension_numbers = #tpu.dot_dimension_numbers<[1], [0], [0], [1], [0, 0, 1, 1], [], []>} : vector<512x128xbf16>, vector<128x128xbf16>, vector<512x128xf32> -> vector<512x128xf32>
    %7 = arith.addf %3, %6 : vector<512x128xf32>
    %c0_6 = arith.constant 0 : index
    %c0_7 = arith.constant 0 : index
    %8 = vector.load %arg7[%c0_6, %c0_7] : memref<512x128xf32, #tpu.memory_space<vmem>>, vector<512x128xf32>
    tpu.vector_store %arg7[%c0_6, %c0_7], %7 {strides = array<i32>} : memref<512x128xf32, #tpu.memory_space<vmem>>, vector<512x128xf32>,
    %c0_i32_8 = arith.constant 0 : i32
    %9 = arith.cmpi eq, %arg2, %c0_i32_8 : i32
    %10 = arith.extui %9 : i1 to i32
    %c0_i32_9 = arith.constant 0 : i32
    %11 = arith.cmpi ne, %10, %c0_i32_9 : i32
    scf.if %11 {
      %c0_10 = arith.constant 0 : index
      %c0_11 = arith.constant 0 : index
      %12 = vector.load %arg7[%c0_10, %c0_11] : memref<512x128xf32, #tpu.memory_space<vmem>>, vector<512x128xf32>
      %c0_12 = arith.constant 0 : index
      %c0_13 = arith.constant 0 : index
      %13 = vector.load %arg5[%c0_12, %c0_13] : memref<1x128xf32, #tpu.memory_space<vmem>>, vector<1x128xf32>
      %14 = vector.broadcast %13 : vector<1x128xf32> to vector<512x128xf32>
      %15 = arith.addf %12, %14 : vector<512x128xf32>
      %cst_14 = arith.constant 0.000000e+00 : f32
      %16 = vector.broadcast %cst_14 : f32 to vector<512x128xf32>
      %17 = arith.cmpf oge, %15, %16 : vector<512x128xf32>
      %cst_15 = arith.constant 2.000000e-01 : f32
      %18 = vector.broadcast %cst_15 : f32 to vector<512x128xf32>
      %19 = arith.mulf %18, %15 : vector<512x128xf32>
      %20 = arith.select %17, %15, %19 : vector<512x128xi1>, vector<512x128xf32>
      %c0_16 = arith.constant 0 : index
      %c0_17 = arith.constant 0 : index
      %21 = vector.load %arg6[%c0_16, %c0_17] : memref<512x128xf32, #tpu.memory_space<vmem>>, vector<512x128xf32>
      tpu.vector_store %arg6[%c0_16, %c0_17], %20 {strides = array<i32>} : memref<512x128xf32, #tpu.memory_space<vmem>>, vector<512x128xf32>,
    } else {
    }
    return
  }
  func.func @transform_0(%arg0: i32, %arg1: i32, %arg2: i32) -> (i32, i32) {
    %c0_i32 = arith.constant 0 : i32
    return %arg0, %arg2 : i32, i32
  }
  func.func @transform_1(%arg0: i32, %arg1: i32, %arg2: i32) -> (i32, i32) {
    %c0_i32 = arith.constant 0 : i32
    return %arg2, %arg1 : i32, i32
  }
  func.func @transform_2(%arg0: i32, %arg1: i32, %arg2: i32) -> (i32, i32) {
    %c0_i32 = arith.constant 0 : i32
    %c0_i32_0 = arith.constant 0 : i32
    return %c0_i32, %arg1 : i32, i32
  }
  func.func @transform_3(%arg0: i32, %arg1: i32, %arg2: i32) -> (i32, i32) {
    %c0_i32 = arith.constant 0 : i32
    return %arg0, %arg1 : i32, i32
  }
}

</mosaic_0001>

<llo_original>
// kernel: tpu_custom_call.1
$region0: #{tpu_custom_call.1}
  #allocation0 [shape = 'u32[]', space=smem, size = 0x4, offset = 0x4, fixed_abs, tag = 'smem constant byte address 0x4 - core index']
  #allocation1 [shape = 'u32[72,128]{1,0:T(1,128)}', space=vmem, size = 0x9000, scoped, tag = 'internal scratch']
  #allocation2 [shape = 'f32[512,128]{1,0:T(8,128)}', space=vmem, size = 0x40000, scoped, tag = 'scratch operand']
  %s0 = inlined_call_operand.hbm [shape: bf16[2048,128], index: 0, kind: input, shape index: {}]
  %s1 = inlined_call_operand.hbm [shape: bf16[128,128], index: 1, kind: input, shape index: {}]
  %s2 = inlined_call_operand.vmem [shape: f32[1,128], index: 2, kind: input, shape index: {}]
  %s3 = inlined_call_operand.hbm [shape: f32[2048,128], index: 3, kind: output, shape index: {}]
  %s4 = sld [smem:[#allocation0]]
  $region61: #{tpu_custom_call.1} parent=0
    _
  %s6 = ssub.s32 1, %s4
  %s7 = scalar_select 0, %s6, %s4
  $region1: #{tpu_custom_call.1} parent=0
    #allocation3 [shape = 'u8[262144]{0}', space=vmem, size = 0x40000, scoped, tag = 'input window, operand 0']
    #allocation4 [shape = 's32[2]{0}', space=sflag, size = 0x8, scoped, tag = 'scoped memory for tpu_custom_call.1']
    #allocation5 [shape = 's32[2]{0}', space=sflag, size = 0x8, scoped, tag = 'scoped memory for tpu_custom_call.1']
    #allocation6 [shape = 'u8[32768]{0}', space=vmem, size = 0x8000, scoped, tag = 'input window, operand 1, single buffered']
    #allocation7 [shape = 's32[1]{0}', space=sflag, size = 0x4, scoped, tag = 'scoped memory for tpu_custom_call.1']
    #allocation8 [shape = 'u8[524288]{0}', space=vmem, size = 0x80000, scoped, tag = 'output window, operand 0']
    %8 = vsyncpa [#allocation4], 0
    %s9 = scalar_lea.sflag [#allocation4], 1
    %10 = vsyncpa %s9, 0
    %11 = vsyncpa [#allocation7], 0
    %12 = vsyncpa [#allocation5], 0
    %s13 = scalar_lea.sflag [#allocation5], 1
    %14 = vsyncpa %s13, 0
    loop: start=0, step=1, limit=6
    $region2: #{tpu_custom_call.1} parent=1 // loop_pre_header
      _
    $region3: #{tpu_custom_call.1} parent=1 // loop_header
      %s16 = sphi 0, %s20
      %p17 = scmp.ge.s32.totalorder %s16, 6
      %s23 = sphi 0, %s42
      %s24 = sphi 0, %s38
      %s25 = sphi 0, %s34
      %s26 = sphi 0, %s23
      %s27 = sphi 0, %s24
      %s28 = sphi 0, %s25
      %s29 = sphi 0, %s26
      %s30 = sphi 0, %s27
      %s31 = sphi 0, %s28
      %s47 = sphi 0, %s49
      %s50 = sphi 0, %s47
      %s51 = sphi 0, %s50
      %s67 = sphi 0, %s51
      %s75 = sphi 0, %s77
      %s78 = sphi 0, %s75
      %s79 = sphi 0, %s78
      %s95 = sphi 0, %s79
      %s101 = sphi 0, %s103
      %s104 = sphi 0, %s101
      %s105 = sphi 0, %s104
      %s121 = sphi 0, %s105
      %s129 = sphi 0, %s131
      %s132 = sphi 0, %s129
      %s133 = sphi 0, %s132
      %s149 = sphi 0, %s133
    $region4: #{tpu_custom_call.1} parent=1 // loop_header_branch
      %19 = sbr.rel (%p17) target = $region8
    $region5: #{tpu_custom_call.1} parent=1 // loop_body
      %s21 = ssub.s32 %s16, 1
      %s22 = ssub.s32 %s16, 2
      %s32 = sadd.s32 1, %s25
      %p33 = scmp.ge.s32.totalorder %s32, 1
      %s34 = scalar_select %p33, 0, %s32
      %s35 = sadd.s32 1, %s24
      %s36 = scalar_select %p33, %s35, %s24
      %p37 = scmp.ge.s32.totalorder %s36, 1
      %s38 = scalar_select %p37, 0, %s36
      %s39 = sadd.s32 1, %s23
      %s40 = scalar_select %p37, %s39, %s23
      %p41 = scmp.ge.s32.totalorder %s40, 4
      %s42 = scalar_select %p41, 0, %s40
      %s43 = ssub.s32 %s23, %s42
      %s44 = ssub.s32 %s25, %s34
      %s45 = sor.u32 %s43, %s44
      %p46 = scmp.eq.s32.totalorder %s45, 0
      %s48 = sadd.s32 %s47, 1
      %s49 = scalar_select %p46, %s47, %s48
      %p52 = pneg %p46
      %p53 = scmp.eq.s32.totalorder %s16, 3
      %p54 = por %p52, %p53
      %p55 = scmp.ne.s32.totalorder %s47, %s50
      %p56 = scmp.eq.s32.totalorder %s16, 0
      %p57 = por %p55, %p56
      %p58 = scmp.ne.s32.totalorder %s47, %s50
      %p59 = scmp.eq.s32.totalorder %s21, 3
      %p60 = por %p58, %p59
      %p61 = scmp.ne.s32.totalorder %s50, %s51
      %p62 = scmp.eq.s32.totalorder %s21, 0
      %p63 = por %p61, %p62
      %p64 = scmp.ne.s32.totalorder %s50, %s51
      %p65 = scmp.eq.s32.totalorder %s22, 3
      %p66 = por %p64, %p65
      %p68 = scmp.ne.s32.totalorder %s51, %s67
      %p69 = scmp.eq.s32.totalorder %s22, 0
      %p70 = por %p68, %p69
      %s71 = ssub.s32 %s25, %s34
      %s72 = ssub.s32 %s24, %s38
      %s73 = sor.u32 %s71, %s72
      %p74 = scmp.eq.s32.totalorder %s73, 0
      %s76 = sadd.s32 %s75, 1
      %s77 = scalar_select %p74, %s75, %s76
      %p80 = pneg %p74
      %p81 = scmp.eq.s32.totalorder %s16, 3
      %p82 = por %p80, %p81
      %p83 = scmp.ne.s32.totalorder %s75, %s78
      %p84 = scmp.eq.s32.totalorder %s16, 0
      %p85 = por %p83, %p84
      %p86 = scmp.ne.s32.totalorder %s75, %s78
      %p87 = scmp.eq.s32.totalorder %s21, 3
      %p88 = por %p86, %p87
      %p89 = scmp.ne.s32.totalorder %s78, %s79
      %p90 = scmp.eq.s32.totalorder %s21, 0
      %p91 = por %p89, %p90
      %p92 = scmp.ne.s32.totalorder %s78, %s79
      %p93 = scmp.eq.s32.totalorder %s22, 3
      %p94 = por %p92, %p93
      %p96 = scmp.ne.s32.totalorder %s79, %s95
      %p97 = scmp.eq.s32.totalorder %s22, 0
      %p98 = por %p96, %p97
      %s99 = ssub.s32 %s24, %s38
      %p100 = scmp.eq.s32.totalorder %s99, 0
      %s102 = sadd.s32 %s101, 1
      %s103 = scalar_select %p100, %s101, %s102
      %p106 = pneg %p100
      %p107 = scmp.eq.s32.totalorder %s16, 3
      %p108 = por %p106, %p107
      %p109 = scmp.ne.s32.totalorder %s101, %s104
      %p110 = scmp.eq.s32.totalorder %s16, 0
      %p111 = por %p109, %p110
      %p112 = scmp.ne.s32.totalorder %s101, %s104
      %p113 = scmp.eq.s32.totalorder %s21, 3
      %p114 = por %p112, %p113
      %p115 = scmp.ne.s32.totalorder %s104, %s105
      %p116 = scmp.eq.s32.totalorder %s21, 0
      %p117 = por %p115, %p116
      %p118 = scmp.ne.s32.totalorder %s104, %s105
      %p119 = scmp.eq.s32.totalorder %s22, 3
      %p120 = por %p118, %p119
      %p122 = scmp.ne.s32.totalorder %s105, %s121
      %p123 = scmp.eq.s32.totalorder %s22, 0
      %p124 = por %p122, %p123
      %s125 = ssub.s32 %s23, %s42
      %s126 = ssub.s32 %s24, %s38
      %s127 = sor.u32 %s125, %s126
      %p128 = scmp.eq.s32.totalorder %s127, 0
      %s130 = sadd.s32 %s129, 1
      %s131 = scalar_select %p128, %s129, %s130
      %p134 = pneg %p128
      %p135 = scmp.eq.s32.totalorder %s16, 3
      %p136 = por %p134, %p135
      %p137 = scmp.ne.s32.totalorder %s129, %s132
      %p138 = scmp.eq.s32.totalorder %s16, 0
      %p139 = por %p137, %p138
      %p140 = scmp.ne.s32.totalorder %s129, %s132
      %p141 = scmp.eq.s32.totalorder %s21, 3
      %p142 = por %p140, %p141
      %p143 = scmp.ne.s32.totalorder %s132, %s133
      %p144 = scmp.eq.s32.totalorder %s21, 0
      %p145 = por %p143, %p144
      %p146 = scmp.ne.s32.totalorder %s132, %s133
      %p147 = scmp.eq.s32.totalorder %s22, 3
      %p148 = por %p146, %p147
      %p150 = scmp.ne.s32.totalorder %s133, %s149
      %p151 = scmp.eq.s32.totalorder %s22, 0
      %p152 = por %p150, %p151
      %p153 = scmp.le.s32.totalorder 1, %s16
      %p154 = scmp.lt.s32.totalorder %s16, 5
      %p155 = pnand %p153, %p154
      %p156 = pneg %p155
      // Predicated region
      $region9: #{tpu_custom_call.1} parent=5 // pred_check
        _
      $region10: #{tpu_custom_call.1} parent=5 // pred_check_branch
        %158 = sbr.rel (%p155) target = $region12
      $region11: #{tpu_custom_call.1} parent=5 // pred_region
        %s159 = ssub.s32 %s16, 1
        // Predicated region
        $region13: #{tpu_custom_call.1} parent=11 // pred_check
          %p160 = pneg %p91
        $region14: #{tpu_custom_call.1} parent=11 // pred_check_branch
          %162 = sbr.rel (%p160) target = $region16
        $region15: #{tpu_custom_call.1} parent=11 // pred_region
          %s163 = smul.u32 16, %s28
          %165 = vsyncadd [#allocation7], 0
          %s166 = sadd.s32 %s27, %s163
          %s167 = smul.addr %s166, 4
          %s168 = scalar_lea.hbm %s1, %s167
          %s169 = sshll.u32 %s168, 4
          %s170 = int_to_ptr.hbm [resolvable:$true] %s169
          %s171 = sshll.u32 [#allocation6], 4
          %s172 = int_to_ptr.vmem [resolvable:$true] %s171
          %177 = dma.hbm_to_vmem [thread:$0]  %s170, 1024, %s172, [#allocation7], 64, 64, 4
        $region16: #{tpu_custom_call.1} parent=11 // pred_fallthru
          _
        // Predicated region
        $region17: #{tpu_custom_call.1} parent=11 // pred_check
          %p178 = pneg %p117
        $region18: #{tpu_custom_call.1} parent=11 // pred_check_branch
          %180 = sbr.rel (%p178) target = $region20
        $region19: #{tpu_custom_call.1} parent=11 // pred_region
          %p181 = scmp.lt.s32.totalorder %s27, 0
          %s182 = scalar_select %p181, %s27, 0
          %s183 = scalar_lea.vmem %s2, %s182
        $region20: #{tpu_custom_call.1} parent=11 // pred_fallthru
          _
      $region12: #{tpu_custom_call.1} parent=5 // pred_fallthru
        _
      %p184 = scmp.lt.s32.totalorder %s16, 4
      // Predicated region
      $region21: #{tpu_custom_call.1} parent=5 // pred_check
        %p185 = pneg %p184
      $region22: #{tpu_custom_call.1} parent=5 // pred_check_branch
        %187 = sbr.rel (%p185) target = $region24
      $region23: #{tpu_custom_call.1} parent=5 // pred_region
        // Predicated region
        $region25: #{tpu_custom_call.1} parent=23 // pred_check
          %p188 = pneg %p57
        $region26: #{tpu_custom_call.1} parent=23 // pred_check_branch
          %190 = sbr.rel (%p188) target = $region28
        $region27: #{tpu_custom_call.1} parent=23 // pred_region
          %s191 = sand.u32 %s47, 1
          %s192 = scalar_lea.sflag [#allocation4], %s191
          %s193 = sand.u32 %s47, 1
          %s194 = smul.addr %s193, 256
          %s195 = scalar_lea.vmem [#allocation3], %s194
          %s196 = smul.u32 64, %s23
          %198 = vsyncadd %s192, 0
          %s199 = sadd.s32 %s25, %s196
          %s200 = smul.addr %s199, 4
          %s201 = scalar_lea.hbm %s0, %s200
          %s202 = sshll.u32 %s201, 4
          %s203 = int_to_ptr.hbm [resolvable:$true] %s202
          %s204 = sshll.u32 %s195, 4
          %s205 = int_to_ptr.vmem [resolvable:$true] %s204
          %210 = dma.hbm_to_vmem [thread:$0]  %s203, 4096, %s205, %s192, 64, 64, 4
        $region28: #{tpu_custom_call.1} parent=23 // pred_fallthru
          _
      $region24: #{tpu_custom_call.1} parent=5 // pred_fallthru
        _
      %p211 = scmp.le.s32.totalorder 1, %s16
      %p212 = scmp.lt.s32.totalorder %s16, 5
      %p213 = pnand %p211, %p212
      %p214 = pneg %p213
      // Predicated region
      $region29: #{tpu_custom_call.1} parent=5 // pred_check
        _
      $region30: #{tpu_custom_call.1} parent=5 // pred_check_branch
        %216 = sbr.rel (%p213) target = $region32
      $region31: #{tpu_custom_call.1} parent=5 // pred_region
        %s217 = ssub.s32 %s16, 1
        %s218 = sand.u32 %s50, 1
        %s219 = scalar_lea.sflag [#allocation4], %s218
        %s220 = sand.u32 %s50, 1
        %s221 = smul.addr %s220, 256
        %s222 = scalar_lea.vmem [#allocation3], %s221
        // Predicated region
        $region33: #{tpu_custom_call.1} parent=31 // pred_check
          %p223 = pneg %p63
        $region34: #{tpu_custom_call.1} parent=31 // pred_check_branch
          %225 = sbr.rel (%p223) target = $region36
        $region35: #{tpu_custom_call.1} parent=31 // pred_region
          %227 = dma.done %s219, 4096
        $region36: #{tpu_custom_call.1} parent=31 // pred_fallthru
          _
        // Predicated region
        $region37: #{tpu_custom_call.1} parent=31 // pred_check
          %p228 = pneg %p91
        $region38: #{tpu_custom_call.1} parent=31 // pred_check_branch
          %230 = sbr.rel (%p228) target = $region40
        $region39: #{tpu_custom_call.1} parent=31 // pred_region
          %232 = dma.done [#allocation7], 1024
        $region40: #{tpu_custom_call.1} parent=31 // pred_fallthru
          _
        %s233 = sand.u32 %s50, 1
        %s234 = scalar_lea.sflag [#allocation4], %s233
        %s235 = sand.u32 %s50, 1
        %s236 = smul.addr %s235, 256
        %s237 = scalar_lea.vmem [#allocation3], %s236
        %p238 = pneg %p63
        %p239 = pneg %p60
        %p240 = pneg %p91
        %p241 = pneg %p88
        %p242 = scmp.lt.s32.totalorder %s27, 0
        %s243 = scalar_select %p242, %s27, 0
        %s244 = scalar_lea.vmem %s2, %s243
        %p245 = pneg %p117
        %p246 = pneg %p114
        %p247 = pneg %p145
        %p248 = pneg %p142
        %s249 = sand.u32 %s132, 1
        %s250 = scalar_lea.sflag [#allocation5], %s249
        %s251 = sand.u32 %s132, 1
        %s252 = smul.addr %s251, 512
        %s253 = scalar_lea.vmem [#allocation8], %s252
        %s254 = smul.u32 64, %s26
        %s255 = smul.u32 16, %s28
        %p256 = scmp.lt.s32.totalorder %s27, 0
        %s257 = scalar_select %p256, %s27, 0
        %s258 = scalar_lea.vmem %s2, %s257
        %s259 = smul.u32 64, %s26
        %p260 = scmp.eq.s32.totalorder %s28, 0
        // Predicated region
        $region41: #{tpu_custom_call.1} parent=31 // pred_check
          %p261 = pneg %p260
        $region42: #{tpu_custom_call.1} parent=31 // pred_check_branch
          %263 = sbr.rel (%p261) target = $region44
        $region43: #{tpu_custom_call.1} parent=31 // pred_region
          %264 = vst [vmem:[#allocation2] sm:$0xff] 0.0
          %265 = vst [vmem:[#allocation2 + $0x8] sm:$0xff] 0.0
          %266 = vst [vmem:[#allocation2 + $0x10] sm:$0xff] 0.0
          %267 = vst [vmem:[#allocation2 + $0x18] sm:$0xff] 0.0
          %268 = vst [vmem:[#allocation2 + $0x20] sm:$0xff] 0.0
          %269 = vst [vmem:[#allocation2 + $0x28] sm:$0xff] 0.0
          %270 = vst [vmem:[#allocation2 + $0x30] sm:$0xff] 0.0
          %271 = vst [vmem:[#allocation2 + $0x38] sm:$0xff] 0.0
          %272 = vst [vmem:[#allocation2 + $0x40] sm:$0xff] 0.0
          %273 = vst [vmem:[#allocation2 + $0x48] sm:$0xff] 0.0
          %274 = vst [vmem:[#allocation2 + $0x50] sm:$0xff] 0.0
          %275 = vst [vmem:[#allocation2 + $0x58] sm:$0xff] 0.0
          %276 = vst [vmem:[#allocation2 + $0x60] sm:$0xff] 0.0
          %277 = vst [vmem:[#allocation2 + $0x68] sm:$0xff] 0.0
          %278 = vst [vmem:[#allocation2 + $0x70] sm:$0xff] 0.0
          %279 = vst [vmem:[#allocation2 + $0x78] sm:$0xff] 0.0
          %280 = vst [vmem:[#allocation2 + $0x80] sm:$0xff] 0.0
          %281 = vst [vmem:[#allocation2 + $0x88] sm:$0xff] 0.0
          %282 = vst [vmem:[#allocation2 + $0x90] sm:$0xff] 0.0
          %283 = vst [vmem:[#allocation2 + $0x98] sm:$0xff] 0.0
          %284 = vst [vmem:[#allocation2 + $0xa0] sm:$0xff] 0.0
          %285 = vst [vmem:[#allocation2 + $0xa8] sm:$0xff] 0.0
          %286 = vst [vmem:[#allocation2 + $0xb0] sm:$0xff] 0.0
          %287 = vst [vmem:[#allocation2 + $0xb8] sm:$0xff] 0.0
          %288 = vst [vmem:[#allocation2 + $0xc0] sm:$0xff] 0.0
          %289 = vst [vmem:[#allocation2 + $0xc8] sm:$0xff] 0.0
          %290 = vst [vmem:[#allocation2 + $0xd0] sm:$0xff] 0.0
          %291 = vst [vmem:[#allocation2 + $0xd8] sm:$0xff] 0.0
          %292 = vst [vmem:[#allocation2 + $0xe0] sm:$0xff] 0.0
          %293 = vst [vmem:[#allocation2 + $0xe8] sm:$0xff] 0.0
          %294 = vst [vmem:[#allocation2 + $0xf0] sm:$0xff] 0.0
          %295 = vst [vmem:[#allocation2 + $0xf8] sm:$0xff] 0.0
          %296 = vst [vmem:[#allocation2 + $0x100] sm:$0xff] 0.0
          %297 = vst [vmem:[#allocation2 + $0x108] sm:$0xff] 0.0
          %298 = vst [vmem:[#allocation2 + $0x110] sm:$0xff] 0.0
          %299 = vst [vmem:[#allocation2 + $0x118] sm:$0xff] 0.0
          %300 = vst [vmem:[#allocation2 + $0x120] sm:$0xff] 0.0
          %301 = vst [vmem:[#allocation2 + $0x128] sm:$0xff] 0.0
          %302 = vst [vmem:[#allocation2 + $0x130] sm:$0xff] 0.0
          %303 = vst [vmem:[#allocation2 + $0x138] sm:$0xff] 0.0
          %304 = vst [vmem:[#allocation2 + $0x140] sm:$0xff] 0.0
          %305 = vst [vmem:[#allocation2 + $0x148] sm:$0xff] 0.0
          %306 = vst [vmem:[#allocation2 + $0x150] sm:$0xff] 0.0
          %307 = vst [vmem:[#allocation2 + $0x158] sm:$0xff] 0.0
          %308 = vst [vmem:[#allocation2 + $0x160] sm:$0xff] 0.0
          %309 = vst [vmem:[#allocation2 + $0x168] sm:$0xff] 0.0
          %310 = vst [vmem:[#allocation2 + $0x170] sm:$0xff] 0.0
          %311 = vst [vmem:[#allocation2 + $0x178] sm:$0xff] 0.0
          %312 = vst [vmem:[#allocation2 + $0x180] sm:$0xff] 0.0
          %313 = vst [vmem:[#allocation2 + $0x188] sm:$0xff] 0.0
          %314 = vst [vmem:[#allocation2 + $0x190] sm:$0xff] 0.0
          %315 = vst [vmem:[#allocation2 + $0x198] sm:$0xff] 0.0
          %316 = vst [vmem:[#allocation2 + $0x1a0] sm:$0xff] 0.0
          %317 = vst [vmem:[#allocation2 + $0x1a8] sm:$0xff] 0.0
          %318 = vst [vmem:[#allocation2 + $0x1b0] sm:$0xff] 0.0
          %319 = vst [vmem:[#allocation2 + $0x1b8] sm:$0xff] 0.0
          %320 = vst [vmem:[#allocation2 + $0x1c0] sm:$0xff] 0.0
          %321 = vst [vmem:[#allocation2 + $0x1c8] sm:$0xff] 0.0
          %322 = vst [vmem:[#allocation2 + $0x1d0] sm:$0xff] 0.0
          %323 = vst [vmem:[#allocation2 + $0x1d8] sm:$0xff] 0.0
          %324 = vst [vmem:[#allocation2 + $0x1e0] sm:$0xff] 0.0
          %325 = vst [vmem:[#allocation2 + $0x1e8] sm:$0xff] 0.0
          %326 = vst [vmem:[#allocation2 + $0x1f0] sm:$0xff] 0.0
          %327 = vst [vmem:[#allocation2 + $0x1f8] sm:$0xff] 0.0
        $region44: #{tpu_custom_call.1} parent=31 // pred_fallthru
          _
        %v328 = vld [vmem:[#allocation2] sm:$0xff]
        %v329 = vld [vmem:[#allocation2 + $0x8] sm:$0xff]
        %v330 = vld [vmem:[#allocation2 + $0x10] sm:$0xff]
        %v331 = vld [vmem:[#allocation2 + $0x18] sm:$0xff]
        %v332 = vld [vmem:[#allocation2 + $0x20] sm:$0xff]
        %v333 = vld [vmem:[#allocation2 + $0x28] sm:$0xff]
        %v334 = vld [vmem:[#allocation2 + $0x30] sm:$0xff]
        %v335 = vld [vmem:[#allocation2 + $0x38] sm:$0xff]
        %v336 = vld [vmem:[#allocation2 + $0x40] sm:$0xff]
        %v337 = vld [vmem:[#allocation2 + $0x48] sm:$0xff]
        %v338 = vld [vmem:[#allocation2 + $0x50] sm:$0xff]
        %v339 = vld [vmem:[#allocation2 + $0x58] sm:$0xff]
        %v340 = vld [vmem:[#allocation2 + $0x60] sm:$0xff]
        %v341 = vld [vmem:[#allocation2 + $0x68] sm:$0xff]
        %v342 = vld [vmem:[#allocation2 + $0x70] sm:$0xff]
        %v343 = vld [vmem:[#allocation2 + $0x78] sm:$0xff]
        %v344 = vld [vmem:[#allocation2 + $0x80] sm:$0xff]
        %v345 = vld [vmem:[#allocation2 + $0x88] sm:$0xff]
        %v346 = vld [vmem:[#allocation2 + $0x90] sm:$0xff]
        %v347 = vld [vmem:[#allocation2 + $0x98] sm:$0xff]
        %v348 = vld [vmem:[#allocation2 + $0xa0] sm:$0xff]
        %v349 = vld [vmem:[#allocation2 + $0xa8] sm:$0xff]
        %v350 = vld [vmem:[#allocation2 + $0xb0] sm:$0xff]
        %v351 = vld [vmem:[#allocation2 + $0xb8] sm:$0xff]
        %v352 = vld [vmem:[#allocation2 + $0xc0] sm:$0xff]
        %v353 = vld [vmem:[#allocation2 + $0xc8] sm:$0xff]
        %v354 = vld [vmem:[#allocation2 + $0xd0] sm:$0xff]
        %v355 = vld [vmem:[#allocation2 + $0xd8] sm:$0xff]
        %v356 = vld [vmem:[#allocation2 + $0xe0] sm:$0xff]
        %v357 = vld [vmem:[#allocation2 + $0xe8] sm:$0xff]
        %v358 = vld [vmem:[#allocation2 + $0xf0] sm:$0xff]
        %v359 = vld [vmem:[#allocation2 + $0xf8] sm:$0xff]
        %v360 = vld [vmem:[#allocation2 + $0x100] sm:$0xff]
        %v361 = vld [vmem:[#allocation2 + $0x108] sm:$0xff]
        %v362 = vld [vmem:[#allocation2 + $0x110] sm:$0xff]
        %v363 = vld [vmem:[#allocation2 + $0x118] sm:$0xff]
        %v364 = vld [vmem:[#allocation2 + $0x120] sm:$0xff]
        %v365 = vld [vmem:[#allocation2 + $0x128] sm:$0xff]
        %v366 = vld [vmem:[#allocation2 + $0x130] sm:$0xff]
        %v367 = vld [vmem:[#allocation2 + $0x138] sm:$0xff]
        %v368 = vld [vmem:[#allocation2 + $0x140] sm:$0xff]
        %v369 = vld [vmem:[#allocation2 + $0x148] sm:$0xff]
        %v370 = vld [vmem:[#allocation2 + $0x150] sm:$0xff]
        %v371 = vld [vmem:[#allocation2 + $0x158] sm:$0xff]
        %v372 = vld [vmem:[#allocation2 + $0x160] sm:$0xff]
        %v373 = vld [vmem:[#allocation2 + $0x168] sm:$0xff]
        %v374 = vld [vmem:[#allocation2 + $0x170] sm:$0xff]
        %v375 = vld [vmem:[#allocation2 + $0x178] sm:$0xff]
        %v376 = vld [vmem:[#allocation2 + $0x180] sm:$0xff]
        %v377 = vld [vmem:[#allocation2 + $0x188] sm:$0xff]
        %v378 = vld [vmem:[#allocation2 + $0x190] sm:$0xff]
        %v379 = vld [vmem:[#allocation2 + $0x198] sm:$0xff]
        %v380 = vld [vmem:[#allocation2 + $0x1a0] sm:$0xff]
        %v381 = vld [vmem:[#allocation2 + $0x1a8] sm:$0xff]
        %v382 = vld [vmem:[#allocation2 + $0x1b0] sm:$0xff]
        %v383 = vld [vmem:[#allocation2 + $0x1b8] sm:$0xff]
        %v384 = vld [vmem:[#allocation2 + $0x1c0] sm:$0xff]
        %v385 = vld [vmem:[#allocation2 + $0x1c8] sm:$0xff]
        %v386 = vld [vmem:[#allocation2 + $0x1d0] sm:$0xff]
        %v387 = vld [vmem:[#allocation2 + $0x1d8] sm:$0xff]
        %v388 = vld [vmem:[#allocation2 + $0x1e0] sm:$0xff]
        %v389 = vld [vmem:[#allocation2 + $0x1e8] sm:$0xff]
        %v390 = vld [vmem:[#allocation2 + $0x1f0] sm:$0xff]
        %v391 = vld [vmem:[#allocation2 + $0x1f8] sm:$0xff]
        %v392 = vld [vmem:[%s222] sm:$0xf]
        %v393 = vld [vmem:[%s222 + $0x4] sm:$0xf]
        %v394 = vld [vmem:[%s222 + $0x8] sm:$0xf]
        %v395 = vld [vmem:[%s222 + $0xc] sm:$0xf]
        %v396 = vld [vmem:[%s222 + $0x10] sm:$0xf]
        %v397 = vld [vmem:[%s222 + $0x14] sm:$0xf]
        %v398 = vld [vmem:[%s222 + $0x18] sm:$0xf]
        %v399 = vld [vmem:[%s222 + $0x1c] sm:$0xf]
        %v400 = vld [vmem:[%s222 + $0x20] sm:$0xf]
        %v401 = vld [vmem:[%s222 + $0x24] sm:$0xf]
        %v402 = vld [vmem:[%s222 + $0x28] sm:$0xf]
        %v403 = vld [vmem:[%s222 + $0x2c] sm:$0xf]
        %v404 = vld [vmem:[%s222 + $0x30] sm:$0xf]
        %v405 = vld [vmem:[%s222 + $0x34] sm:$0xf]
        %v406 = vld [vmem:[%s222 + $0x38] sm:$0xf]
        %v407 = vld [vmem:[%s222 + $0x3c] sm:$0xf]
        %v408 = vld [vmem:[%s222 + $0x40] sm:$0xf]
        %v409 = vld [vmem:[%s222 + $0x44] sm:$0xf]
        %v410 = vld [vmem:[%s222 + $0x48] sm:$0xf]
        %v411 = vld [vmem:[%s222 + $0x4c] sm:$0xf]
        %v412 = vld [vmem:[%s222 + $0x50] sm:$0xf]
        %v413 = vld [vmem:[%s222 + $0x54] sm:$0xf]
        %v414 = vld [vmem:[%s222 + $0x58] sm:$0xf]
        %v415 = vld [vmem:[%s222 + $0x5c] sm:$0xf]
        %v416 = vld [vmem:[%s222 + $0x60] sm:$0xf]
        %v417 = vld [vmem:[%s222 + $0x64] sm:$0xf]
        %v418 = vld [vmem:[%s222 + $0x68] sm:$0xf]
        %v419 = vld [vmem:[%s222 + $0x6c] sm:$0xf]
        %v420 = vld [vmem:[%s222 + $0x70] sm:$0xf]
        %v421 = vld [vmem:[%s222 + $0x74] sm:$0xf]
        %v422 = vld [vmem:[%s222 + $0x78] sm:$0xf]
        %v423 = vld [vmem:[%s222 + $0x7c] sm:$0xf]
        %v424 = vld [vmem:[%s222 + $0x80] sm:$0xf]
        %v425 = vld [vmem:[%s222 + $0x84] sm:$0xf]
        %v426 = vld [vmem:[%s222 + $0x88] sm:$0xf]
        %v427 = vld [vmem:[%s222 + $0x8c] sm:$0xf]
        %v428 = vld [vmem:[%s222 + $0x90] sm:$0xf]
        %v429 = vld [vmem:[%s222 + $0x94] sm:$0xf]
        %v430 = vld [vmem:[%s222 + $0x98] sm:$0xf]
        %v431 = vld [vmem:[%s222 + $0x9c] sm:$0xf]
        %v432 = vld [vmem:[%s222 + $0xa0] sm:$0xf]
        %v433 = vld [vmem:[%s222 + $0xa4] sm:$0xf]
        %v434 = vld [vmem:[%s222 + $0xa8] sm:$0xf]
        %v435 = vld [vmem:[%s222 + $0xac] sm:$0xf]
        %v436 = vld [vmem:[%s222 + $0xb0] sm:$0xf]
        %v437 = vld [vmem:[%s222 + $0xb4] sm:$0xf]
        %v438 = vld [vmem:[%s222 + $0xb8] sm:$0xf]
        %v439 = vld [vmem:[%s222 + $0xbc] sm:$0xf]
        %v440 = vld [vmem:[%s222 + $0xc0] sm:$0xf]
        %v441 = vld [vmem:[%s222 + $0xc4] sm:$0xf]
        %v442 = vld [vmem:[%s222 + $0xc8] sm:$0xf]
        %v443 = vld [vmem:[%s222 + $0xcc] sm:$0xf]
        %v444 = vld [vmem:[%s222 + $0xd0] sm:$0xf]
        %v445 = vld [vmem:[%s222 + $0xd4] sm:$0xf]
        %v446 = vld [vmem:[%s222 + $0xd8] sm:$0xf]
        %v447 = vld [vmem:[%s222 + $0xdc] sm:$0xf]
        %v448 = vld [vmem:[%s222 + $0xe0] sm:$0xf]
        %v449 = vld [vmem:[%s222 + $0xe4] sm:$0xf]
        %v450 = vld [vmem:[%s222 + $0xe8] sm:$0xf]
        %v451 = vld [vmem:[%s222 + $0xec] sm:$0xf]
        %v452 = vld [vmem:[%s222 + $0xf0] sm:$0xf]
        %v453 = vld [vmem:[%s222 + $0xf4] sm:$0xf]
        %v454 = vld [vmem:[%s222 + $0xf8] sm:$0xf]
        %v455 = vld [vmem:[%s222 + $0xfc] sm:$0xf]
        %v456 = vld [vmem:[#allocation6] sm:$0xf]
        %v457 = vld [vmem:[#allocation6 + $0x4] sm:$0xf]
        %v458 = vld [vmem:[#allocation6 + $0x8] sm:$0xf]
        %v459 = vld [vmem:[#allocation6 + $0xc] sm:$0xf]
        %v460 = vld [vmem:[#allocation6 + $0x10] sm:$0xf]
        %v461 = vld [vmem:[#allocation6 + $0x14] sm:$0xf]
        %v462 = vld [vmem:[#allocation6 + $0x18] sm:$0xf]
        %v463 = vld [vmem:[#allocation6 + $0x1c] sm:$0xf]
        %v464 = vld [vmem:[#allocation6 + $0x20] sm:$0xf]
        %v465 = vld [vmem:[#allocation6 + $0x24] sm:$0xf]
        %v466 = vld [vmem:[#allocation6 + $0x28] sm:$0xf]
        %v467 = vld [vmem:[#allocation6 + $0x2c] sm:$0xf]
        %v468 = vld [vmem:[#allocation6 + $0x30] sm:$0xf]
        %v469 = vld [vmem:[#allocation6 + $0x34] sm:$0xf]
        %v470 = vld [vmem:[#allocation6 + $0x38] sm:$0xf]
        %v471 = vld [vmem:[#allocation6 + $0x3c] sm:$0xf]
        %v536 = vunpack.c.l.b16 %v392
        %v537 = vunpack.c.l.b16 %v393
        %v538 = vunpack.c.l.b16 %v394
        %v539 = vunpack.c.l.b16 %v395
        %v540 = vunpack.c.l.b16 %v396
        %v541 = vunpack.c.l.b16 %v397
        %v542 = vunpack.c.l.b16 %v398
        %v543 = vunpack.c.l.b16 %v399
        %v544 = vunpack.c.l.b16 %v400
        %v545 = vunpack.c.l.b16 %v401
        %v546 = vunpack.c.l.b16 %v402
        %v547 = vunpack.c.l.b16 %v403
        %v548 = vunpack.c.l.b16 %v404
        %v549 = vunpack.c.l.b16 %v405
        %v550 = vunpack.c.l.b16 %v406
        %v551 = vunpack.c.l.b16 %v407
        %v552 = vunpack.c.l.b16 %v408
        %v553 = vunpack.c.l.b16 %v409
        %v554 = vunpack.c.l.b16 %v410
        %v555 = vunpack.c.l.b16 %v411
        %v556 = vunpack.c.l.b16 %v412
        %v557 = vunpack.c.l.b16 %v413
        %v558 = vunpack.c.l.b16 %v414
        %v559 = vunpack.c.l.b16 %v415
        %v560 = vunpack.c.l.b16 %v416
        %v561 = vunpack.c.l.b16 %v417
        %v562 = vunpack.c.l.b16 %v418
        %v563 = vunpack.c.l.b16 %v419
        %v564 = vunpack.c.l.b16 %v420
        %v565 = vunpack.c.l.b16 %v421
        %v566 = vunpack.c.l.b16 %v422
        %v567 = vunpack.c.l.b16 %v423
        %v568 = vunpack.c.l.b16 %v424
        %v569 = vunpack.c.l.b16 %v425
        %v570 = vunpack.c.l.b16 %v426
        %v571 = vunpack.c.l.b16 %v427
        %v572 = vunpack.c.l.b16 %v428
        %v573 = vunpack.c.l.b16 %v429
        %v574 = vunpack.c.l.b16 %v430
        %v575 = vunpack.c.l.b16 %v431
        %v576 = vunpack.c.l.b16 %v432
        %v577 = vunpack.c.l.b16 %v433
        %v578 = vunpack.c.l.b16 %v434
        %v579 = vunpack.c.l.b16 %v435
        %v580 = vunpack.c.l.b16 %v436
        %v581 = vunpack.c.l.b16 %v437
        %v582 = vunpack.c.l.b16 %v438
        %v583 = vunpack.c.l.b16 %v439
        %v584 = vunpack.c.l.b16 %v440
        %v585 = vunpack.c.l.b16 %v441
        %v586 = vunpack.c.l.b16 %v442
        %v587 = vunpack.c.l.b16 %v443
        %v588 = vunpack.c.l.b16 %v444
        %v589 = vunpack.c.l.b16 %v445
        %v590 = vunpack.c.l.b16 %v446
        %v591 = vunpack.c.l.b16 %v447
        %v592 = vunpack.c.l.b16 %v448
        %v593 = vunpack.c.l.b16 %v449
        %v594 = vunpack.c.l.b16 %v450
        %v595 = vunpack.c.l.b16 %v451
        %v596 = vunpack.c.l.b16 %v452
        %v597 = vunpack.c.l.b16 %v453
        %v598 = vunpack.c.l.b16 %v454
        %v599 = vunpack.c.l.b16 %v455
        %v600 = vpack.c.b16 %v537, %v536
        %v601 = vpack.c.b16 %v539, %v538
        %v602 = vpack.c.b16 %v541, %v540
        %v603 = vpack.c.b16 %v543, %v542
        %v604 = vpack.c.b16 %v545, %v544
        %v605 = vpack.c.b16 %v547, %v546
        %v606 = vpack.c.b16 %v549, %v548
        %v607 = vpack.c.b16 %v551, %v550
        %v608 = vpack.c.b16 %v553, %v552
        %v609 = vpack.c.b16 %v555, %v554
        %v610 = vpack.c.b16 %v557, %v556
        %v611 = vpack.c.b16 %v559, %v558
        %v612 = vpack.c.b16 %v561, %v560
        %v613 = vpack.c.b16 %v563, %v562
        %v614 = vpack.c.b16 %v565, %v564
        %v615 = vpack.c.b16 %v567, %v566
        %v616 = vpack.c.b16 %v569, %v568
        %v617 = vpack.c.b16 %v571, %v570
        %v618 = vpack.c.b16 %v573, %v572
        %v619 = vpack.c.b16 %v575, %v574
        %v620 = vpack.c.b16 %v577, %v576
        %v621 = vpack.c.b16 %v579, %v578
        %v622 = vpack.c.b16 %v581, %v580
        %v623 = vpack.c.b16 %v583, %v582
        %v624 = vpack.c.b16 %v585, %v584
        %v625 = vpack.c.b16 %v587, %v586
        %v626 = vpack.c.b16 %v589, %v588
        %v627 = vpack.c.b16 %v591, %v590
        %v628 = vpack.c.b16 %v593, %v592
        %v629 = vpack.c.b16 %v595, %v594
        %v630 = vpack.c.b16 %v597, %v596
        %v631 = vpack.c.b16 %v599, %v598
        %v680 = vunpack.c.l.b16 %v456
        %v681 = vunpack.c.l.b16 %v457
        %v682 = vunpack.c.l.b16 %v458
        %v683 = vunpack.c.l.b16 %v459
        %v684 = vunpack.c.l.b16 %v460
        %v685 = vunpack.c.l.b16 %v461
        %v686 = vunpack.c.l.b16 %v462
        %v687 = vunpack.c.l.b16 %v463
        %v688 = vunpack.c.l.b16 %v464
        %v689 = vunpack.c.l.b16 %v465
        %v690 = vunpack.c.l.b16 %v466
        %v691 = vunpack.c.l.b16 %v467
        %v692 = vunpack.c.l.b16 %v468
        %v693 = vunpack.c.l.b16 %v469
        %v694 = vunpack.c.l.b16 %v470
        %v695 = vunpack.c.l.b16 %v471
        %v696 = vpack.c.b16 %v681, %v680
        %v697 = vpack.c.b16 %v683, %v682
        %v698 = vpack.c.b16 %v685, %v684
        %v699 = vpack.c.b16 %v687, %v686
        %v700 = vpack.c.b16 %v689, %v688
        %v701 = vpack.c.b16 %v691, %v690
        %v702 = vpack.c.b16 %v693, %v692
        %v703 = vpack.c.b16 %v695, %v694
        %712 = vmatpush.bf16.msra.mxu0 %v703
        %713 = vmatpush.bf16.msra.mxu0 %v702
        %714 = vmatpush.bf16.msra.mxu0 %v701
        %715 = vmatpush.bf16.msra.mxu0 %v700
        %716 = vmatpush.bf16.msra.mxu0 %v699
        %717 = vmatpush.bf16.msra.mxu0 %v698
        %718 = vmatpush.bf16.msra.mxu0 %v697
        %719 = vmatpush.bf16.msra.mxu0 %v696
        %720 = vmatmul.bf16.gmra.mxu0 %v600
        %v721 = vpop.f32.mrf.mxu0
        %v722 = vadd.f32 0.0, %v721
        %v723 = vpop.f32.mrf.mxu0
        %v724 = vadd.f32 0.0, %v723
        %725 = vmatmul.bf16.gmra.mxu0 %v601
        %v726 = vpop.f32.mrf.mxu0
        %v727 = vadd.f32 0.0, %v726
        %v728 = vpop.f32.mrf.mxu0
        %v729 = vadd.f32 0.0, %v728
        %730 = vmatmul.bf16.gmra.mxu0 %v602
        %v731 = vpop.f32.mrf.mxu0
        %v732 = vadd.f32 0.0, %v731
        %v733 = vpop.f32.mrf.mxu0
        %v734 = vadd.f32 0.0, %v733
        %735 = vmatmul.bf16.gmra.mxu0 %v603
        %v736 = vpop.f32.mrf.mxu0
        %v737 = vadd.f32 0.0, %v736
        %v738 = vpop.f32.mrf.mxu0
        %v739 = vadd.f32 0.0, %v738
        %740 = vmatmul.bf16.gmra.mxu0 %v604
        %v741 = vpop.f32.mrf.mxu0
        %v742 = vadd.f32 0.0, %v741
        %v743 = vpop.f32.mrf.mxu0
        %v744 = vadd.f32 0.0, %v743
        %745 = vmatmul.bf16.gmra.mxu0 %v605
        %v746 = vpop.f32.mrf.mxu0
        %v747 = vadd.f32 0.0, %v746
        %v748 = vpop.f32.mrf.mxu0
        %v749 = vadd.f32 0.0, %v748
        %750 = vmatmul.bf16.gmra.mxu0 %v606
        %v751 = vpop.f32.mrf.mxu0
        %v752 = vadd.f32 0.0, %v751
        %v753 = vpop.f32.mrf.mxu0
        %v754 = vadd.f32 0.0, %v753
        %755 = vmatmul.bf16.gmra.mxu0 %v607
        %v756 = vpop.f32.mrf.mxu0
        %v757 = vadd.f32 0.0, %v756
        %v758 = vpop.f32.mrf.mxu0
        %v759 = vadd.f32 0.0, %v758
        %760 = vmatmul.bf16.gmra.mxu0 %v608
        %v761 = vpop.f32.mrf.mxu0
        %v762 = vadd.f32 0.0, %v761
        %v763 = vpop.f32.mrf.mxu0
        %v764 = vadd.f32 0.0, %v763
        %765 = vmatmul.bf16.gmra.mxu0 %v609
        %v766 = vpop.f32.mrf.mxu0
        %v767 = vadd.f32 0.0, %v766
        %v768 = vpop.f32.mrf.mxu0
        %v769 = vadd.f32 0.0, %v768
        %770 = vmatmul.bf16.gmra.mxu0 %v610
        %v771 = vpop.f32.mrf.mxu0
        %v772 = vadd.f32 0.0, %v771
        %v773 = vpop.f32.mrf.mxu0
        %v774 = vadd.f32 0.0, %v773
        %775 = vmatmul.bf16.gmra.mxu0 %v611
        %v776 = vpop.f32.mrf.mxu0
        %v777 = vadd.f32 0.0, %v776
        %v778 = vpop.f32.mrf.mxu0
        %v779 = vadd.f32 0.0, %v778
        %780 = vmatmul.bf16.gmra.mxu0 %v612
        %v781 = vpop.f32.mrf.mxu0
        %v782 = vadd.f32 0.0, %v781
        %v783 = vpop.f32.mrf.mxu0
        %v784 = vadd.f32 0.0, %v783
        %785 = vmatmul.bf16.gmra.mxu0 %v613
        %v786 = vpop.f32.mrf.mxu0
        %v787 = vadd.f32 0.0, %v786
        %v788 = vpop.f32.mrf.mxu0
        %v789 = vadd.f32 0.0, %v788
        %790 = vmatmul.bf16.gmra.mxu0 %v614
        %v791 = vpop.f32.mrf.mxu0
        %v792 = vadd.f32 0.0, %v791
        %v793 = vpop.f32.mrf.mxu0
        %v794 = vadd.f32 0.0, %v793
        %795 = vmatmul.bf16.gmra.mxu0 %v615
        %v796 = vpop.f32.mrf.mxu0
        %v797 = vadd.f32 0.0, %v796
        %v798 = vpop.f32.mrf.mxu0
        %v799 = vadd.f32 0.0, %v798
        %800 = vmatmul.bf16.gmra.mxu0 %v616
        %v801 = vpop.f32.mrf.mxu0
        %v802 = vadd.f32 0.0, %v801
        %v803 = vpop.f32.mrf.mxu0
        %v804 = vadd.f32 0.0, %v803
        %805 = vmatmul.bf16.gmra.mxu0 %v617
        %v806 = vpop.f32.mrf.mxu0
        %v807 = vadd.f32 0.0, %v806
        %v808 = vpop.f32.mrf.mxu0
        %v809 = vadd.f32 0.0, %v808
        %810 = vmatmul.bf16.gmra.mxu0 %v618
        %v811 = vpop.f32.mrf.mxu0
        %v812 = vadd.f32 0.0, %v811
        %v813 = vpop.f32.mrf.mxu0
        %v814 = vadd.f32 0.0, %v813
        %815 = vmatmul.bf16.gmra.mxu0 %v619
        %v816 = vpop.f32.mrf.mxu0
        %v817 = vadd.f32 0.0, %v816
        %v818 = vpop.f32.mrf.mxu0
        %v819 = vadd.f32 0.0, %v818
        %820 = vmatmul.bf16.gmra.mxu0 %v620
        %v821 = vpop.f32.mrf.mxu0
        %v822 = vadd.f32 0.0, %v821
        %v823 = vpop.f32.mrf.mxu0
        %v824 = vadd.f32 0.0, %v823
        %825 = vmatmul.bf16.gmra.mxu0 %v621
        %v826 = vpop.f32.mrf.mxu0
        %v827 = vadd.f32 0.0, %v826
        %v828 = vpop.f32.mrf.mxu0
        %v829 = vadd.f32 0.0, %v828
        %830 = vmatmul.bf16.gmra.mxu0 %v622
        %v831 = vpop.f32.mrf.mxu0
        %v832 = vadd.f32 0.0, %v831
        %v833 = vpop.f32.mrf.mxu0
        %v834 = vadd.f32 0.0, %v833
        %835 = vmatmul.bf16.gmra.mxu0 %v623
        %v836 = vpop.f32.mrf.mxu0
        %v837 = vadd.f32 0.0, %v836
        %v838 = vpop.f32.mrf.mxu0
        %v839 = vadd.f32 0.0, %v838
        %840 = vmatmul.bf16.gmra.mxu0 %v624
        %v841 = vpop.f32.mrf.mxu0
        %v842 = vadd.f32 0.0, %v841
        %v843 = vpop.f32.mrf.mxu0
        %v844 = vadd.f32 0.0, %v843
        %845 = vmatmul.bf16.gmra.mxu0 %v625
        %v846 = vpop.f32.mrf.mxu0
        %v847 = vadd.f32 0.0, %v846
        %v848 = vpop.f32.mrf.mxu0
        %v849 = vadd.f32 0.0, %v848
        %850 = vmatmul.bf16.gmra.mxu0 %v626
        %v851 = vpop.f32.mrf.mxu0
        %v852 = vadd.f32 0.0, %v851
        %v853 = vpop.f32.mrf.mxu0
        %v854 = vadd.f32 0.0, %v853
        %855 = vmatmul.bf16.gmra.mxu0 %v627
        %v856 = vpop.f32.mrf.mxu0
        %v857 = vadd.f32 0.0, %v856
        %v858 = vpop.f32.mrf.mxu0
        %v859 = vadd.f32 0.0, %v858
        %860 = vmatmul.bf16.gmra.mxu0 %v628
        %v861 = vpop.f32.mrf.mxu0
        %v862 = vadd.f32 0.0, %v861
        %v863 = vpop.f32.mrf.mxu0
        %v864 = vadd.f32 0.0, %v863
        %865 = vmatmul.bf16.gmra.mxu0 %v629
        %v866 = vpop.f32.mrf.mxu0
        %v867 = vadd.f32 0.0, %v866
        %v868 = vpop.f32.mrf.mxu0
        %v869 = vadd.f32 0.0, %v868
        %870 = vmatmul.bf16.gmra.mxu0 %v630
        %v871 = vpop.f32.mrf.mxu0
        %v872 = vadd.f32 0.0, %v871
        %v873 = vpop.f32.mrf.mxu0
        %v874 = vadd.f32 0.0, %v873
        %875 = vmatmul.bf16.gmra.mxu0 %v631
        %v876 = vpop.f32.mrf.mxu0
        %v877 = vadd.f32 0.0, %v876
        %v878 = vpop.f32.mrf.mxu0
        %v879 = vadd.f32 0.0, %v878
        %880 = vdwg.mxu0
        %v881 = vadd.f32 %v328, %v722
        %v882 = vadd.f32 %v329, %v724
        %v883 = vadd.f32 %v330, %v727
        %v884 = vadd.f32 %v331, %v729
        %v885 = vadd.f32 %v332, %v732
        %v886 = vadd.f32 %v333, %v734
        %v887 = vadd.f32 %v334, %v737
        %v888 = vadd.f32 %v335, %v739
        %v889 = vadd.f32 %v336, %v742
        %v890 = vadd.f32 %v337, %v744
        %v891 = vadd.f32 %v338, %v747
        %v892 = vadd.f32 %v339, %v749
        %v893 = vadd.f32 %v340, %v752
        %v894 = vadd.f32 %v341, %v754
        %v895 = vadd.f32 %v342, %v757
        %v896 = vadd.f32 %v343, %v759
        %v897 = vadd.f32 %v344, %v762
        %v898 = vadd.f32 %v345, %v764
        %v899 = vadd.f32 %v346, %v767
        %v900 = vadd.f32 %v347, %v769
        %v901 = vadd.f32 %v348, %v772
        %v902 = vadd.f32 %v349, %v774
        %v903 = vadd.f32 %v350, %v777
        %v904 = vadd.f32 %v351, %v779
        %v905 = vadd.f32 %v352, %v782
        %v906 = vadd.f32 %v353, %v784
        %v907 = vadd.f32 %v354, %v787
        %v908 = vadd.f32 %v355, %v789
        %v909 = vadd.f32 %v356, %v792
        %v910 = vadd.f32 %v357, %v794
        %v911 = vadd.f32 %v358, %v797
        %v912 = vadd.f32 %v359, %v799
        %v913 = vadd.f32 %v360, %v802
        %v914 = vadd.f32 %v361, %v804
        %v915 = vadd.f32 %v362, %v807
        %v916 = vadd.f32 %v363, %v809
        %v917 = vadd.f32 %v364, %v812
        %v918 = vadd.f32 %v365, %v814
        %v919 = vadd.f32 %v366, %v817
        %v920 = vadd.f32 %v367, %v819
        %v921 = vadd.f32 %v368, %v822
        %v922 = vadd.f32 %v369, %v824
        %v923 = vadd.f32 %v370, %v827
        %v924 = vadd.f32 %v371, %v829
        %v925 = vadd.f32 %v372, %v832
        %v926 = vadd.f32 %v373, %v834
        %v927 = vadd.f32 %v374, %v837
        %v928 = vadd.f32 %v375, %v839
        %v929 = vadd.f32 %v376, %v842
        %v930 = vadd.f32 %v377, %v844
        %v931 = vadd.f32 %v378, %v847
        %v932 = vadd.f32 %v379, %v849
        %v933 = vadd.f32 %v380, %v852
        %v934 = vadd.f32 %v381, %v854
        %v935 = vadd.f32 %v382, %v857
        %v936 = vadd.f32 %v383, %v859
        %v937 = vadd.f32 %v384, %v862
        %v938 = vadd.f32 %v385, %v864
        %v939 = vadd.f32 %v386, %v867
        %v940 = vadd.f32 %v387, %v869
        %v941 = vadd.f32 %v388, %v872
        %v942 = vadd.f32 %v389, %v874
        %v943 = vadd.f32 %v390, %v877
        %v944 = vadd.f32 %v391, %v879
        %945 = vst [vmem:[#allocation2] sm:$0xff] %v881
        %946 = vst [vmem:[#allocation2 + $0x8] sm:$0xff] %v882
        %947 = vst [vmem:[#allocation2 + $0x10] sm:$0xff] %v883
        %948 = vst [vmem:[#allocation2 + $0x18] sm:$0xff] %v884
        %949 = vst [vmem:[#allocation2 + $0x20] sm:$0xff] %v885
        %950 = vst [vmem:[#allocation2 + $0x28] sm:$0xff] %v886
        %951 = vst [vmem:[#allocation2 + $0x30] sm:$0xff] %v887
        %952 = vst [vmem:[#allocation2 + $0x38] sm:$0xff] %v888
        %953 = vst [vmem:[#allocation2 + $0x40] sm:$0xff] %v889
        %954 = vst [vmem:[#allocation2 + $0x48] sm:$0xff] %v890
        %955 = vst [vmem:[#allocation2 + $0x50] sm:$0xff] %v891
        %956 = vst [vmem:[#allocation2 + $0x58] sm:$0xff] %v892
        %957 = vst [vmem:[#allocation2 + $0x60] sm:$0xff] %v893
        %958 = vst [vmem:[#allocation2 + $0x68] sm:$0xff] %v894
        %959 = vst [vmem:[#allocation2 + $0x70] sm:$0xff] %v895
        %960 = vst [vmem:[#allocation2 + $0x78] sm:$0xff] %v896
        %961 = vst [vmem:[#allocation2 + $0x80] sm:$0xff] %v897
        %962 = vst [vmem:[#allocation2 + $0x88] sm:$0xff] %v898
        %963 = vst [vmem:[#allocation2 + $0x90] sm:$0xff] %v899
        %964 = vst [vmem:[#allocation2 + $0x98] sm:$0xff] %v900
        %965 = vst [vmem:[#allocation2 + $0xa0] sm:$0xff] %v901
        %966 = vst [vmem:[#allocation2 + $0xa8] sm:$0xff] %v902
        %967 = vst [vmem:[#allocation2 + $0xb0] sm:$0xff] %v903
        %968 = vst [vmem:[#allocation2 + $0xb8] sm:$0xff] %v904
        %969 = vst [vmem:[#allocation2 + $0xc0] sm:$0xff] %v905
        %970 = vst [vmem:[#allocation2 + $0xc8] sm:$0xff] %v906
        %971 = vst [vmem:[#allocation2 + $0xd0] sm:$0xff] %v907
        %972 = vst [vmem:[#allocation2 + $0xd8] sm:$0xff] %v908
        %973 = vst [vmem:[#allocation2 + $0xe0] sm:$0xff] %v909
        %974 = vst [vmem:[#allocation2 + $0xe8] sm:$0xff] %v910
        %975 = vst [vmem:[#allocation2 + $0xf0] sm:$0xff] %v911
        %976 = vst [vmem:[#allocation2 + $0xf8] sm:$0xff] %v912
        %977 = vst [vmem:[#allocation2 + $0x100] sm:$0xff] %v913
        %978 = vst [vmem:[#allocation2 + $0x108] sm:$0xff] %v914
        %979 = vst [vmem:[#allocation2 + $0x110] sm:$0xff] %v915
        %980 = vst [vmem:[#allocation2 + $0x118] sm:$0xff] %v916
        %981 = vst [vmem:[#allocation2 + $0x120] sm:$0xff] %v917
        %982 = vst [vmem:[#allocation2 + $0x128] sm:$0xff] %v918
        %983 = vst [vmem:[#allocation2 + $0x130] sm:$0xff] %v919
        %984 = vst [vmem:[#allocation2 + $0x138] sm:$0xff] %v920
        %985 = vst [vmem:[#allocation2 + $0x140] sm:$0xff] %v921
        %986 = vst [vmem:[#allocation2 + $0x148] sm:$0xff] %v922
        %987 = vst [vmem:[#allocation2 + $0x150] sm:$0xff] %v923
        %988 = vst [vmem:[#allocation2 + $0x158] sm:$0xff] %v924
        %989 = vst [vmem:[#allocation2 + $0x160] sm:$0xff] %v925
        %990 = vst [vmem:[#allocation2 + $0x168] sm:$0xff] %v926
        %991 = vst [vmem:[#allocation2 + $0x170] sm:$0xff] %v927
        %992 = vst [vmem:[#allocation2 + $0x178] sm:$0xff] %v928
        %993 = vst [vmem:[#allocation2 + $0x180] sm:$0xff] %v929
        %994 = vst [vmem:[#allocation2 + $0x188] sm:$0xff] %v930
        %995 = vst [vmem:[#allocation2 + $0x190] sm:$0xff] %v931
        %996 = vst [vmem:[#allocation2 + $0x198] sm:$0xff] %v932
        %997 = vst [vmem:[#allocation2 + $0x1a0] sm:$0xff] %v933
        %998 = vst [vmem:[#allocation2 + $0x1a8] sm:$0xff] %v934
        %999 = vst [vmem:[#allocation2 + $0x1b0] sm:$0xff] %v935
        %1000 = vst [vmem:[#allocation2 + $0x1b8] sm:$0xff] %v936
        %1001 = vst [vmem:[#allocation2 + $0x1c0] sm:$0xff] %v937
        %1002 = vst [vmem:[#allocation2 + $0x1c8] sm:$0xff] %v938
        %1003 = vst [vmem:[#allocation2 + $0x1d0] sm:$0xff] %v939
        %1004 = vst [vmem:[#allocation2 + $0x1d8] sm:$0xff] %v940
        %1005 = vst [vmem:[#allocation2 + $0x1e0] sm:$0xff] %v941
        %1006 = vst [vmem:[#allocation2 + $0x1e8] sm:$0xff] %v942
        %1007 = vst [vmem:[#allocation2 + $0x1f0] sm:$0xff] %v943
        %1008 = vst [vmem:[#allocation2 + $0x1f8] sm:$0xff] %v944
        // Predicated region
        $region45: #{tpu_custom_call.1} parent=31 // pred_check
          %p1009 = pneg %p260
        $region46: #{tpu_custom_call.1} parent=31 // pred_check_branch
          %1011 = sbr.rel (%p1009) target = $region48
        $region47: #{tpu_custom_call.1} parent=31 // pred_region
          %v1012 = vld [vmem:[#allocation2] sm:$0xff]
          %v1013 = vld [vmem:[#allocation2 + $0x8] sm:$0xff]
          %v1014 = vld [vmem:[#allocation2 + $0x10] sm:$0xff]
          %v1015 = vld [vmem:[#allocation2 + $0x18] sm:$0xff]
          %v1016 = vld [vmem:[#allocation2 + $0x20] sm:$0xff]
          %v1017 = vld [vmem:[#allocation2 + $0x28] sm:$0xff]
          %v1018 = vld [vmem:[#allocation2 + $0x30] sm:$0xff]
          %v1019 = vld [vmem:[#allocation2 + $0x38] sm:$0xff]
          %v1020 = vld [vmem:[#allocation2 + $0x40] sm:$0xff]
          %v1021 = vld [vmem:[#allocation2 + $0x48] sm:$0xff]
          %v1022 = vld [vmem:[#allocation2 + $0x50] sm:$0xff]
          %v1023 = vld [vmem:[#allocation2 + $0x58] sm:$0xff]
          %v1024 = vld [vmem:[#allocation2 + $0x60] sm:$0xff]
          %v1025 = vld [vmem:[#allocation2 + $0x68] sm:$0xff]
          %v1026 = vld [vmem:[#allocation2 + $0x70] sm:$0xff]
          %v1027 = vld [vmem:[#allocation2 + $0x78] sm:$0xff]
          %v1028 = vld [vmem:[#allocation2 + $0x80] sm:$0xff]
          %v1029 = vld [vmem:[#allocation2 + $0x88] sm:$0xff]
          %v1030 = vld [vmem:[#allocation2 + $0x90] sm:$0xff]
          %v1031 = vld [vmem:[#allocation2 + $0x98] sm:$0xff]
          %v1032 = vld [vmem:[#allocation2 + $0xa0] sm:$0xff]
          %v1033 = vld [vmem:[#allocation2 + $0xa8] sm:$0xff]
          %v1034 = vld [vmem:[#allocation2 + $0xb0] sm:$0xff]
          %v1035 = vld [vmem:[#allocation2 + $0xb8] sm:$0xff]
          %v1036 = vld [vmem:[#allocation2 + $0xc0] sm:$0xff]
          %v1037 = vld [vmem:[#allocation2 + $0xc8] sm:$0xff]
          %v1038 = vld [vmem:[#allocation2 + $0xd0] sm:$0xff]
          %v1039 = vld [vmem:[#allocation2 + $0xd8] sm:$0xff]
          %v1040 = vld [vmem:[#allocation2 + $0xe0] sm:$0xff]
          %v1041 = vld [vmem:[#allocation2 + $0xe8] sm:$0xff]
          %v1042 = vld [vmem:[#allocation2 + $0xf0] sm:$0xff]
          %v1043 = vld [vmem:[#allocation2 + $0xf8] sm:$0xff]
          %v1044 = vld [vmem:[#allocation2 + $0x100] sm:$0xff]
          %v1045 = vld [vmem:[#allocation2 + $0x108] sm:$0xff]
          %v1046 = vld [vmem:[#allocation2 + $0x110] sm:$0xff]
          %v1047 = vld [vmem:[#allocation2 + $0x118] sm:$0xff]
          %v1048 = vld [vmem:[#allocation2 + $0x120] sm:$0xff]
          %v1049 = vld [vmem:[#allocation2 + $0x128] sm:$0xff]
          %v1050 = vld [vmem:[#allocation2 + $0x130] sm:$0xff]
          %v1051 = vld [vmem:[#allocation2 + $0x138] sm:$0xff]
          %v1052 = vld [vmem:[#allocation2 + $0x140] sm:$0xff]
          %v1053 = vld [vmem:[#allocation2 + $0x148] sm:$0xff]
          %v1054 = vld [vmem:[#allocation2 + $0x150] sm:$0xff]
          %v1055 = vld [vmem:[#allocation2 + $0x158] sm:$0xff]
          %v1056 = vld [vmem:[#allocation2 + $0x160] sm:$0xff]
          %v1057 = vld [vmem:[#allocation2 + $0x168] sm:$0xff]
          %v1058 = vld [vmem:[#allocation2 + $0x170] sm:$0xff]
          %v1059 = vld [vmem:[#allocation2 + $0x178] sm:$0xff]
          %v1060 = vld [vmem:[#allocation2 + $0x180] sm:$0xff]
          %v1061 = vld [vmem:[#allocation2 + $0x188] sm:$0xff]
          %v1062 = vld [vmem:[#allocation2 + $0x190] sm:$0xff]
          %v1063 = vld [vmem:[#allocation2 + $0x198] sm:$0xff]
          %v1064 = vld [vmem:[#allocation2 + $0x1a0] sm:$0xff]
          %v1065 = vld [vmem:[#allocation2 + $0x1a8] sm:$0xff]
          %v1066 = vld [vmem:[#allocation2 + $0x1b0] sm:$0xff]
          %v1067 = vld [vmem:[#allocation2 + $0x1b8] sm:$0xff]
          %v1068 = vld [vmem:[#allocation2 + $0x1c0] sm:$0xff]
          %v1069 = vld [vmem:[#allocation2 + $0x1c8] sm:$0xff]
          %v1070 = vld [vmem:[#allocation2 + $0x1d0] sm:$0xff]
          %v1071 = vld [vmem:[#allocation2 + $0x1d8] sm:$0xff]
          %v1072 = vld [vmem:[#allocation2 + $0x1e0] sm:$0xff]
          %v1073 = vld [vmem:[#allocation2 + $0x1e8] sm:$0xff]
          %v1074 = vld [vmem:[#allocation2 + $0x1f0] sm:$0xff]
          %v1075 = vld [vmem:[#allocation2 + $0x1f8] sm:$0xff]
          %v1076 = vld [vmem:[%s258] sm:$0x1]
          %v1078 = vperm.slane %v1076, 0
          %v1080 = vadd.f32 %v1012, %v1078
          %v1081 = vadd.f32 %v1013, %v1078
          %v1082 = vadd.f32 %v1014, %v1078
          %v1083 = vadd.f32 %v1015, %v1078
          %v1084 = vadd.f32 %v1016, %v1078
          %v1085 = vadd.f32 %v1017, %v1078
          %v1086 = vadd.f32 %v1018, %v1078
          %v1087 = vadd.f32 %v1019, %v1078
          %v1088 = vadd.f32 %v1020, %v1078
          %v1089 = vadd.f32 %v1021, %v1078
          %v1090 = vadd.f32 %v1022, %v1078
          %v1091 = vadd.f32 %v1023, %v1078
          %v1092 = vadd.f32 %v1024, %v1078
          %v1093 = vadd.f32 %v1025, %v1078
          %v1094 = vadd.f32 %v1026, %v1078
          %v1095 = vadd.f32 %v1027, %v1078
          %v1096 = vadd.f32 %v1028, %v1078
          %v1097 = vadd.f32 %v1029, %v1078
          %v1098 = vadd.f32 %v1030, %v1078
          %v1099 = vadd.f32 %v1031, %v1078
          %v1100 = vadd.f32 %v1032, %v1078
          %v1101 = vadd.f32 %v1033, %v1078
          %v1102 = vadd.f32 %v1034, %v1078
          %v1103 = vadd.f32 %v1035, %v1078
          %v1104 = vadd.f32 %v1036, %v1078
          %v1105 = vadd.f32 %v1037, %v1078
          %v1106 = vadd.f32 %v1038, %v1078
          %v1107 = vadd.f32 %v1039, %v1078
          %v1108 = vadd.f32 %v1040, %v1078
          %v1109 = vadd.f32 %v1041, %v1078
          %v1110 = vadd.f32 %v1042, %v1078
          %v1111 = vadd.f32 %v1043, %v1078
          %v1112 = vadd.f32 %v1044, %v1078
          %v1113 = vadd.f32 %v1045, %v1078
          %v1114 = vadd.f32 %v1046, %v1078
          %v1115 = vadd.f32 %v1047, %v1078
          %v1116 = vadd.f32 %v1048, %v1078
          %v1117 = vadd.f32 %v1049, %v1078
          %v1118 = vadd.f32 %v1050, %v1078
          %v1119 = vadd.f32 %v1051, %v1078
          %v1120 = vadd.f32 %v1052, %v1078
          %v1121 = vadd.f32 %v1053, %v1078
          %v1122 = vadd.f32 %v1054, %v1078
          %v1123 = vadd.f32 %v1055, %v1078
          %v1124 = vadd.f32 %v1056, %v1078
          %v1125 = vadd.f32 %v1057, %v1078
          %v1126 = vadd.f32 %v1058, %v1078
          %v1127 = vadd.f32 %v1059, %v1078
          %v1128 = vadd.f32 %v1060, %v1078
          %v1129 = vadd.f32 %v1061, %v1078
          %v1130 = vadd.f32 %v1062, %v1078
          %v1131 = vadd.f32 %v1063, %v1078
          %v1132 = vadd.f32 %v1064, %v1078
          %v1133 = vadd.f32 %v1065, %v1078
          %v1134 = vadd.f32 %v1066, %v1078
          %v1135 = vadd.f32 %v1067, %v1078
          %v1136 = vadd.f32 %v1068, %v1078
          %v1137 = vadd.f32 %v1069, %v1078
          %v1138 = vadd.f32 %v1070, %v1078
          %v1139 = vadd.f32 %v1071, %v1078
          %v1140 = vadd.f32 %v1072, %v1078
          %v1141 = vadd.f32 %v1073, %v1078
          %v1142 = vadd.f32 %v1074, %v1078
          %v1143 = vadd.f32 %v1075, %v1078
          %vm1144 = vcmp.ge.f32.partialorder %v1080, 0.0
          %vm1145 = vcmp.ge.f32.partialorder %v1081, 0.0
          %vm1146 = vcmp.ge.f32.partialorder %v1082, 0.0
          %vm1147 = vcmp.ge.f32.partialorder %v1083, 0.0
          %vm1148 = vcmp.ge.f32.partialorder %v1084, 0.0
          %vm1149 = vcmp.ge.f32.partialorder %v1085, 0.0
          %vm1150 = vcmp.ge.f32.partialorder %v1086, 0.0
          %vm1151 = vcmp.ge.f32.partialorder %v1087, 0.0
          %vm1152 = vcmp.ge.f32.partialorder %v1088, 0.0
          %vm1153 = vcmp.ge.f32.partialorder %v1089, 0.0
          %vm1154 = vcmp.ge.f32.partialorder %v1090, 0.0
          %vm1155 = vcmp.ge.f32.partialorder %v1091, 0.0
          %vm1156 = vcmp.ge.f32.partialorder %v1092, 0.0
          %vm1157 = vcmp.ge.f32.partialorder %v1093, 0.0
          %vm1158 = vcmp.ge.f32.partialorder %v1094, 0.0
          %vm1159 = vcmp.ge.f32.partialorder %v1095, 0.0
          %vm1160 = vcmp.ge.f32.partialorder %v1096, 0.0
          %vm1161 = vcmp.ge.f32.partialorder %v1097, 0.0
          %vm1162 = vcmp.ge.f32.partialorder %v1098, 0.0
          %vm1163 = vcmp.ge.f32.partialorder %v1099, 0.0
          %vm1164 = vcmp.ge.f32.partialorder %v1100, 0.0
          %vm1165 = vcmp.ge.f32.partialorder %v1101, 0.0
          %vm1166 = vcmp.ge.f32.partialorder %v1102, 0.0
          %vm1167 = vcmp.ge.f32.partialorder %v1103, 0.0
          %vm1168 = vcmp.ge.f32.partialorder %v1104, 0.0
          %vm1169 = vcmp.ge.f32.partialorder %v1105, 0.0
          %vm1170 = vcmp.ge.f32.partialorder %v1106, 0.0
          %vm1171 = vcmp.ge.f32.partialorder %v1107, 0.0
          %vm1172 = vcmp.ge.f32.partialorder %v1108, 0.0
          %vm1173 = vcmp.ge.f32.partialorder %v1109, 0.0
          %vm1174 = vcmp.ge.f32.partialorder %v1110, 0.0
          %vm1175 = vcmp.ge.f32.partialorder %v1111, 0.0
          %vm1176 = vcmp.ge.f32.partialorder %v1112, 0.0
          %vm1177 = vcmp.ge.f32.partialorder %v1113, 0.0
          %vm1178 = vcmp.ge.f32.partialorder %v1114, 0.0
          %vm1179 = vcmp.ge.f32.partialorder %v1115, 0.0
          %vm1180 = vcmp.ge.f32.partialorder %v1116, 0.0
          %vm1181 = vcmp.ge.f32.partialorder %v1117, 0.0
          %vm1182 = vcmp.ge.f32.partialorder %v1118, 0.0
          %vm1183 = vcmp.ge.f32.partialorder %v1119, 0.0
          %vm1184 = vcmp.ge.f32.partialorder %v1120, 0.0
          %vm1185 = vcmp.ge.f32.partialorder %v1121, 0.0
          %vm1186 = vcmp.ge.f32.partialorder %v1122, 0.0
          %vm1187 = vcmp.ge.f32.partialorder %v1123, 0.0
          %vm1188 = vcmp.ge.f32.partialorder %v1124, 0.0
          %vm1189 = vcmp.ge.f32.partialorder %v1125, 0.0
          %vm1190 = vcmp.ge.f32.partialorder %v1126, 0.0
          %vm1191 = vcmp.ge.f32.partialorder %v1127, 0.0
          %vm1192 = vcmp.ge.f32.partialorder %v1128, 0.0
          %vm1193 = vcmp.ge.f32.partialorder %v1129, 0.0
          %vm1194 = vcmp.ge.f32.partialorder %v1130, 0.0
          %vm1195 = vcmp.ge.f32.partialorder %v1131, 0.0
          %vm1196 = vcmp.ge.f32.partialorder %v1132, 0.0
          %vm1197 = vcmp.ge.f32.partialorder %v1133, 0.0
          %vm1198 = vcmp.ge.f32.partialorder %v1134, 0.0
          %vm1199 = vcmp.ge.f32.partialorder %v1135, 0.0
          %vm1200 = vcmp.ge.f32.partialorder %v1136, 0.0
          %vm1201 = vcmp.ge.f32.partialorder %v1137, 0.0
          %vm1202 = vcmp.ge.f32.partialorder %v1138, 0.0
          %vm1203 = vcmp.ge.f32.partialorder %v1139, 0.0
          %vm1204 = vcmp.ge.f32.partialorder %v1140, 0.0
          %vm1205 = vcmp.ge.f32.partialorder %v1141, 0.0
          %vm1206 = vcmp.ge.f32.partialorder %v1142, 0.0
          %vm1207 = vcmp.ge.f32.partialorder %v1143, 0.0
          %v1208 = vmul.f32 %v1080, 0.2
          %v1209 = vmul.f32 %v1081, 0.2
          %v1210 = vmul.f32 %v1082, 0.2
          %v1211 = vmul.f32 %v1083, 0.2
          %v1212 = vmul.f32 %v1084, 0.2
          %v1213 = vmul.f32 %v1085, 0.2
          %v1214 = vmul.f32 %v1086, 0.2
          %v1215 = vmul.f32 %v1087, 0.2
          %v1216 = vmul.f32 %v1088, 0.2
          %v1217 = vmul.f32 %v1089, 0.2
          %v1218 = vmul.f32 %v1090, 0.2
          %v1219 = vmul.f32 %v1091, 0.2
          %v1220 = vmul.f32 %v1092, 0.2
          %v1221 = vmul.f32 %v1093, 0.2
          %v1222 = vmul.f32 %v1094, 0.2
          %v1223 = vmul.f32 %v1095, 0.2
          %v1224 = vmul.f32 %v1096, 0.2
          %v1225 = vmul.f32 %v1097, 0.2
          %v1226 = vmul.f32 %v1098, 0.2
          %v1227 = vmul.f32 %v1099, 0.2
          %v1228 = vmul.f32 %v1100, 0.2
          %v1229 = vmul.f32 %v1101, 0.2
          %v1230 = vmul.f32 %v1102, 0.2
          %v1231 = vmul.f32 %v1103, 0.2
          %v1232 = vmul.f32 %v1104, 0.2
          %v1233 = vmul.f32 %v1105, 0.2
          %v1234 = vmul.f32 %v1106, 0.2
          %v1235 = vmul.f32 %v1107, 0.2
          %v1236 = vmul.f32 %v1108, 0.2
          %v1237 = vmul.f32 %v1109, 0.2
          %v1238 = vmul.f32 %v1110, 0.2
          %v1239 = vmul.f32 %v1111, 0.2
          %v1240 = vmul.f32 %v1112, 0.2
          %v1241 = vmul.f32 %v1113, 0.2
          %v1242 = vmul.f32 %v1114, 0.2
          %v1243 = vmul.f32 %v1115, 0.2
          %v1244 = vmul.f32 %v1116, 0.2
          %v1245 = vmul.f32 %v1117, 0.2
          %v1246 = vmul.f32 %v1118, 0.2
          %v1247 = vmul.f32 %v1119, 0.2
          %v1248 = vmul.f32 %v1120, 0.2
          %v1249 = vmul.f32 %v1121, 0.2
          %v1250 = vmul.f32 %v1122, 0.2
          %v1251 = vmul.f32 %v1123, 0.2
          %v1252 = vmul.f32 %v1124, 0.2
          %v1253 = vmul.f32 %v1125, 0.2
          %v1254 = vmul.f32 %v1126, 0.2
          %v1255 = vmul.f32 %v1127, 0.2
          %v1256 = vmul.f32 %v1128, 0.2
          %v1257 = vmul.f32 %v1129, 0.2
          %v1258 = vmul.f32 %v1130, 0.2
          %v1259 = vmul.f32 %v1131, 0.2
          %v1260 = vmul.f32 %v1132, 0.2
          %v1261 = vmul.f32 %v1133, 0.2
          %v1262 = vmul.f32 %v1134, 0.2
          %v1263 = vmul.f32 %v1135, 0.2
          %v1264 = vmul.f32 %v1136, 0.2
          %v1265 = vmul.f32 %v1137, 0.2
          %v1266 = vmul.f32 %v1138, 0.2
          %v1267 = vmul.f32 %v1139, 0.2
          %v1268 = vmul.f32 %v1140, 0.2
          %v1269 = vmul.f32 %v1141, 0.2
          %v1270 = vmul.f32 %v1142, 0.2
          %v1271 = vmul.f32 %v1143, 0.2
          %v1272 = vsel %vm1144, %v1080, %v1208
          %v1273 = vsel %vm1145, %v1081, %v1209
          %v1274 = vsel %vm1146, %v1082, %v1210
          %v1275 = vsel %vm1147, %v1083, %v1211
          %v1276 = vsel %vm1148, %v1084, %v1212
          %v1277 = vsel %vm1149, %v1085, %v1213
          %v1278 = vsel %vm1150, %v1086, %v1214
          %v1279 = vsel %vm1151, %v1087, %v1215
          %v1280 = vsel %vm1152, %v1088, %v1216
          %v1281 = vsel %vm1153, %v1089, %v1217
          %v1282 = vsel %vm1154, %v1090, %v1218
          %v1283 = vsel %vm1155, %v1091, %v1219
          %v1284 = vsel %vm1156, %v1092, %v1220
          %v1285 = vsel %vm1157, %v1093, %v1221
          %v1286 = vsel %vm1158, %v1094, %v1222
          %v1287 = vsel %vm1159, %v1095, %v1223
          %v1288 = vsel %vm1160, %v1096, %v1224
          %v1289 = vsel %vm1161, %v1097, %v1225
          %v1290 = vsel %vm1162, %v1098, %v1226
          %v1291 = vsel %vm1163, %v1099, %v1227
          %v1292 = vsel %vm1164, %v1100, %v1228
          %v1293 = vsel %vm1165, %v1101, %v1229
          %v1294 = vsel %vm1166, %v1102, %v1230
          %v1295 = vsel %vm1167, %v1103, %v1231
          %v1296 = vsel %vm1168, %v1104, %v1232
          %v1297 = vsel %vm1169, %v1105, %v1233
          %v1298 = vsel %vm1170, %v1106, %v1234
          %v1299 = vsel %vm1171, %v1107, %v1235
          %v1300 = vsel %vm1172, %v1108, %v1236
          %v1301 = vsel %vm1173, %v1109, %v1237
          %v1302 = vsel %vm1174, %v1110, %v1238
          %v1303 = vsel %vm1175, %v1111, %v1239
          %v1304 = vsel %vm1176, %v1112, %v1240
          %v1305 = vsel %vm1177, %v1113, %v1241
          %v1306 = vsel %vm1178, %v1114, %v1242
          %v1307 = vsel %vm1179, %v1115, %v1243
          %v1308 = vsel %vm1180, %v1116, %v1244
          %v1309 = vsel %vm1181, %v1117, %v1245
          %v1310 = vsel %vm1182, %v1118, %v1246
          %v1311 = vsel %vm1183, %v1119, %v1247
          %v1312 = vsel %vm1184, %v1120, %v1248
          %v1313 = vsel %vm1185, %v1121, %v1249
          %v1314 = vsel %vm1186, %v1122, %v1250
          %v1315 = vsel %vm1187, %v1123, %v1251
          %v1316 = vsel %vm1188, %v1124, %v1252
          %v1317 = vsel %vm1189, %v1125, %v1253
          %v1318 = vsel %vm1190, %v1126, %v1254
          %v1319 = vsel %vm1191, %v1127, %v1255
          %v1320 = vsel %vm1192, %v1128, %v1256
          %v1321 = vsel %vm1193, %v1129, %v1257
          %v1322 = vsel %vm1194, %v1130, %v1258
          %v1323 = vsel %vm1195, %v1131, %v1259
          %v1324 = vsel %vm1196, %v1132, %v1260
          %v1325 = vsel %vm1197, %v1133, %v1261
          %v1326 = vsel %vm1198, %v1134, %v1262
          %v1327 = vsel %vm1199, %v1135, %v1263
          %v1328 = vsel %vm1200, %v1136, %v1264
          %v1329 = vsel %vm1201, %v1137, %v1265
          %v1330 = vsel %vm1202, %v1138, %v1266
          %v1331 = vsel %vm1203, %v1139, %v1267
          %v1332 = vsel %vm1204, %v1140, %v1268
          %v1333 = vsel %vm1205, %v1141, %v1269
          %v1334 = vsel %vm1206, %v1142, %v1270
          %v1335 = vsel %vm1207, %v1143, %v1271
          %1336 = vst [vmem:[%s253] sm:$0xff] %v1272
          %1337 = vst [vmem:[%s253 + $0x8] sm:$0xff] %v1273
          %1338 = vst [vmem:[%s253 + $0x10] sm:$0xff] %v1274
          %1339 = vst [vmem:[%s253 + $0x18] sm:$0xff] %v1275
          %1340 = vst [vmem:[%s253 + $0x20] sm:$0xff] %v1276
          %1341 = vst [vmem:[%s253 + $0x28] sm:$0xff] %v1277
          %1342 = vst [vmem:[%s253 + $0x30] sm:$0xff] %v1278
          %1343 = vst [vmem:[%s253 + $0x38] sm:$0xff] %v1279
          %1344 = vst [vmem:[%s253 + $0x40] sm:$0xff] %v1280
          %1345 = vst [vmem:[%s253 + $0x48] sm:$0xff] %v1281
          %1346 = vst [vmem:[%s253 + $0x50] sm:$0xff] %v1282
          %1347 = vst [vmem:[%s253 + $0x58] sm:$0xff] %v1283
          %1348 = vst [vmem:[%s253 + $0x60] sm:$0xff] %v1284
          %1349 = vst [vmem:[%s253 + $0x68] sm:$0xff] %v1285
          %1350 = vst [vmem:[%s253 + $0x70] sm:$0xff] %v1286
          %1351 = vst [vmem:[%s253 + $0x78] sm:$0xff] %v1287
          %1352 = vst [vmem:[%s253 + $0x80] sm:$0xff] %v1288
          %1353 = vst [vmem:[%s253 + $0x88] sm:$0xff] %v1289
          %1354 = vst [vmem:[%s253 + $0x90] sm:$0xff] %v1290
          %1355 = vst [vmem:[%s253 + $0x98] sm:$0xff] %v1291
          %1356 = vst [vmem:[%s253 + $0xa0] sm:$0xff] %v1292
          %1357 = vst [vmem:[%s253 + $0xa8] sm:$0xff] %v1293
          %1358 = vst [vmem:[%s253 + $0xb0] sm:$0xff] %v1294
          %1359 = vst [vmem:[%s253 + $0xb8] sm:$0xff] %v1295
          %1360 = vst [vmem:[%s253 + $0xc0] sm:$0xff] %v1296
          %1361 = vst [vmem:[%s253 + $0xc8] sm:$0xff] %v1297
          %1362 = vst [vmem:[%s253 + $0xd0] sm:$0xff] %v1298
          %1363 = vst [vmem:[%s253 + $0xd8] sm:$0xff] %v1299
          %1364 = vst [vmem:[%s253 + $0xe0] sm:$0xff] %v1300
          %1365 = vst [vmem:[%s253 + $0xe8] sm:$0xff] %v1301
          %1366 = vst [vmem:[%s253 + $0xf0] sm:$0xff] %v1302
          %1367 = vst [vmem:[%s253 + $0xf8] sm:$0xff] %v1303
          %1368 = vst [vmem:[%s253 + $0x100] sm:$0xff] %v1304
          %1369 = vst [vmem:[%s253 + $0x108] sm:$0xff] %v1305
          %1370 = vst [vmem:[%s253 + $0x110] sm:$0xff] %v1306
          %1371 = vst [vmem:[%s253 + $0x118] sm:$0xff] %v1307
          %1372 = vst [vmem:[%s253 + $0x120] sm:$0xff] %v1308
          %1373 = vst [vmem:[%s253 + $0x128] sm:$0xff] %v1309
          %1374 = vst [vmem:[%s253 + $0x130] sm:$0xff] %v1310
          %1375 = vst [vmem:[%s253 + $0x138] sm:$0xff] %v1311
          %1376 = vst [vmem:[%s253 + $0x140] sm:$0xff] %v1312
          %1377 = vst [vmem:[%s253 + $0x148] sm:$0xff] %v1313
          %1378 = vst [vmem:[%s253 + $0x150] sm:$0xff] %v1314
          %1379 = vst [vmem:[%s253 + $0x158] sm:$0xff] %v1315
          %1380 = vst [vmem:[%s253 + $0x160] sm:$0xff] %v1316
          %1381 = vst [vmem:[%s253 + $0x168] sm:$0xff] %v1317
          %1382 = vst [vmem:[%s253 + $0x170] sm:$0xff] %v1318
          %1383 = vst [vmem:[%s253 + $0x178] sm:$0xff] %v1319
          %1384 = vst [vmem:[%s253 + $0x180] sm:$0xff] %v1320
          %1385 = vst [vmem:[%s253 + $0x188] sm:$0xff] %v1321
          %1386 = vst [vmem:[%s253 + $0x190] sm:$0xff] %v1322
          %1387 = vst [vmem:[%s253 + $0x198] sm:$0xff] %v1323
          %1388 = vst [vmem:[%s253 + $0x1a0] sm:$0xff] %v1324
          %1389 = vst [vmem:[%s253 + $0x1a8] sm:$0xff] %v1325
          %1390 = vst [vmem:[%s253 + $0x1b0] sm:$0xff] %v1326
          %1391 = vst [vmem:[%s253 + $0x1b8] sm:$0xff] %v1327
          %1392 = vst [vmem:[%s253 + $0x1c0] sm:$0xff] %v1328
          %1393 = vst [vmem:[%s253 + $0x1c8] sm:$0xff] %v1329
          %1394 = vst [vmem:[%s253 + $0x1d0] sm:$0xff] %v1330
          %1395 = vst [vmem:[%s253 + $0x1d8] sm:$0xff] %v1331
          %1396 = vst [vmem:[%s253 + $0x1e0] sm:$0xff] %v1332
          %1397 = vst [vmem:[%s253 + $0x1e8] sm:$0xff] %v1333
          %1398 = vst [vmem:[%s253 + $0x1f0] sm:$0xff] %v1334
          %1399 = vst [vmem:[%s253 + $0x1f8] sm:$0xff] %v1335
        $region48: #{tpu_custom_call.1} parent=31 // pred_fallthru
          _
        %s1400 = sand.u32 %s132, 1
        %s1401 = scalar_lea.sflag [#allocation5], %s1400
        %s1402 = sand.u32 %s132, 1
        %s1403 = smul.addr %s1402, 512
        %s1404 = scalar_lea.vmem [#allocation8], %s1403
        // Predicated region
        $region49: #{tpu_custom_call.1} parent=31 // pred_check
          %p1405 = pneg %p142
        $region50: #{tpu_custom_call.1} parent=31 // pred_check_branch
          %1407 = sbr.rel (%p1405) target = $region52
        $region51: #{tpu_custom_call.1} parent=31 // pred_region
          %s1408 = smul.u32 64, %s26
          %1410 = vsyncadd %s1401, 0
          %s1411 = sadd.s32 %s27, %s1408
          %s1412 = smul.addr %s1411, 8
          %s1413 = scalar_lea.hbm %s3, %s1412
          %s1414 = sshll.u32 %s1404, 4
          %s1415 = int_to_ptr.vmem [resolvable:$true] %s1414
          %s1416 = sshll.u32 %s1413, 4
          %s1417 = int_to_ptr.hbm [resolvable:$true] %s1416
          %1422 = dma.vmem_to_hbm [thread:$0]  %s1415, 8192, %s1417, %s1401, 128, 128, 8
        $region52: #{tpu_custom_call.1} parent=31 // pred_fallthru
          _
      $region32: #{tpu_custom_call.1} parent=5 // pred_fallthru
        _
      %p1423 = scmp.le.s32.totalorder 2, %s16
      // Predicated region
      $region53: #{tpu_custom_call.1} parent=5 // pred_check
        %p1424 = pneg %p1423
      $region54: #{tpu_custom_call.1} parent=5 // pred_check_branch
        %1426 = sbr.rel (%p1424) target = $region56
      $region55: #{tpu_custom_call.1} parent=5 // pred_region
        %s1427 = ssub.s32 %s16, 2
        // Predicated region
        $region57: #{tpu_custom_call.1} parent=55 // pred_check
          %p1428 = pneg %p148
        $region58: #{tpu_custom_call.1} parent=55 // pred_check_branch
          %1430 = sbr.rel (%p1428) target = $region60
        $region59: #{tpu_custom_call.1} parent=55 // pred_region
          %s1431 = sand.u32 %s133, 1
          %s1432 = scalar_lea.sflag [#allocation5], %s1431
          %s1433 = sand.u32 %s133, 1
          %s1434 = smul.addr %s1433, 512
          %s1435 = scalar_lea.vmem [#allocation8], %s1434
          %1437 = dma.done %s1432, 8192
        $region60: #{tpu_custom_call.1} parent=55 // pred_fallthru
          _
      $region56: #{tpu_custom_call.1} parent=5 // pred_fallthru
        _
    $region6: #{tpu_custom_call.1} parent=1 // loop_footer
      %s20 = sadd.s32 1, %s16
    $region7: #{tpu_custom_call.1} parent=1 // loop_footer_branch
      %15 = sbr.rel target = $region3
    $region8: #{tpu_custom_call.1} parent=1 // loop_exit
      _
    %1438 = vsyncpa [#allocation4], 1
    %s1439 = scalar_lea.sflag [#allocation4], 1
    %1440 = vsyncpa %s1439, 1
    %1441 = vsyncpa [#allocation7], 1
    %1442 = vsyncpa [#allocation5], 1
    %s1443 = scalar_lea.sflag [#allocation5], 1
    %1444 = vsyncpa %s1443, 1

</llo_original>
